<compile_context>
chip_gen: v5e
topology: v5e:2x2
jax: 0.10.0
libtpu: 0.0.40
codegen_flags: <defaults>
</compile_context>

<pallas_src>
import numpy as np
import jax
import jax.numpy as jnp
from jax.experimental import pallas as pl
from jax.experimental.pallas import tpu as pltpu


_MODES = ("bilinear", "nearest", "bicubic", "area")
_PREC = jax.lax.Precision.HIGHEST


def _source_index_weights(src_size, dst_size, align_corners):
    """1-D source indices / lerp weights matching torch upsample_bilinear2d."""
    i = np.arange(dst_size, dtype=np.float64)
    if align_corners:
        scale = (src_size - 1) / max(dst_size - 1, 1)
        s = i * scale
    else:
        scale = src_size / dst_size
        s = np.maximum((i + 0.5) * scale - 0.5, 0.0)
    i0 = np.minimum(np.floor(s), src_size - 1).astype(np.int32)
    i1 = np.minimum(i0 + 1, src_size - 1).astype(np.int32)
    w1 = (s - i0).astype(np.float32)
    w0 = (1.0 - w1).astype(np.float32)
    return i0, i1, w0, w1


def _bilinear_matrix(src_size, dst_size, align_corners):
    """[dst_size, src_size] operator R such that R @ v == bilinear resize of v."""
    i0, i1, w0, w1 = _source_index_weights(src_size, dst_size, align_corners)
    t = np.zeros((dst_size, src_size), np.float32)
    rows = np.arange(dst_size)
    np.add.at(t, (rows, i0), w0)
    np.add.at(t, (rows, i1), w1)
    return t


def _make_kernel(num_pairs):
    def kernel(x_ref, t1_ref, t2_ref, o_ref):
        # x_ref:        [R, D]     this gcn layer's nodes (+ ones row, zero pad)
        # t1_ref/t2_ref:[P, F, R]  per-pair fused slice+pad+resize operators
        # o_ref:        [P, F, F]
        x = x_ref[...]
        for p in range(num_pairs):                 # static unroll, P is small
            # a = T1_p @ X  == resized-rows view of padded g1 nodes   [F, D]
            a = jax.lax.dot_general(
                t1_ref[p], x, (((1,), (0,)), ((), ())),
                precision=_PREC, preferred_element_type=jnp.float32)
            # b = T2_p @ X  == resized-rows view of padded g2 nodes   [F, D]
            b = jax.lax.dot_general(
                t2_ref[p], x, (((1,), (0,)), ((), ())),
                precision=_PREC, preferred_element_type=jnp.float32)
            # out_p = a @ b.T == T1 @ (X1 X2^T) @ T2^T                [F, F]
            res = jax.lax.dot_general(
                a, b, (((1,), (1,)), ((), ())),
                precision=_PREC, preferred_element_type=jnp.float32)
            o_ref[p] = res.astype(o_ref.dtype)

    return kernel


def graph_convolution_collector_forward(inputs, ind_list, *, gcn_num, fix_size,
                                        mode, padding_value, align_corners):
    """Pallas implementation of GraphConvolutionCollector.forward.

    inputs:   list (len == gcn_num) of [total_nodes, D] node-embedding arrays.
    ind_list: list of (start, end) row ranges; entries (2p, 2p+1) form pair p
              (mirrors batch_data.merge_data['ind_list']).
    returns:  [gcn_num, num_pairs, 1, fix_size, fix_size]
    """
    assert isinstance(inputs, (list, tuple)) and inputs
    assert len(inputs) == gcn_num
    assert len(ind_list) % 2 == 0 and ind_list
    if mode < 0 or mode > len(_MODES):
        raise RuntimeError("Unknown MNE resize mode {}".format(mode))
    if _MODES[mode] != "bilinear":
        # TODO(synk): nearest / bicubic / area resize modes not implemented.
        raise NotImplementedError("Only the 'bilinear' resize mode is implemented")
    # NOTE: inneract is fixed to False, exactly as GraphConvolutionCollector
    # constructs its MNEResize (so no inner activation is applied to sim).

    num_pairs = len(ind_list) // 2
    total_nodes = int(inputs[0].shape[0])
    dim = int(inputs[0].shape[1])

    # rows = total_nodes real rows + 1 ones-row (carries padding_value bias),
    # rounded up to a sublane multiple.
    n_rows = total_nodes + 1
    r_pad = -(-n_rows // 8) * 8

    # ---- host-side (numpy) fused operators: slice + pad_extra_rows + resize --
    t1 = np.zeros((num_pairs, fix_size, r_pad), np.float32)
    t2 = np.zeros_like(t1)
    for p in range(num_pairs):
        a0, a1 = int(ind_list[2 * p][0]), int(ind_list[2 * p][1])
        b0, b1 = int(ind_list[2 * p + 1][0]), int(ind_list[2 * p + 1][1])
        n1, n2 = a1 - a0, b1 - b0
        m = max(n1, n2)
        r = _bilinear_matrix(m, fix_size, align_corners)        # [F, m]
        t1[p, :, a0:a1] = r[:, :n1]
        t2[p, :, b0:b1] = r[:, :n2]
        # Rows n_i..m-1 of pad_extra_rows hold padding_value: fold their
        # resize weight into the ones-row column (exact, no in-kernel bias).
        t1[p, :, total_nodes] = float(padding_value) * r[:, n1:].sum(axis=1)
        t2[p, :, total_nodes] = float(padding_value) * r[:, n2:].sum(axis=1)
    t1 = jnp.asarray(t1)
    t2 = jnp.asarray(t2)

    # ---- minimal JAX glue: stack layers, append ones row, pad rows to r_pad --
    x = jnp.stack([jnp.asarray(v, jnp.float32) for v in inputs])   # [G, N, D]
    ones_row = jnp.ones((gcn_num, 1, dim), jnp.float32)
    x = jnp.concatenate([x, ones_row], axis=1)                     # [G, N+1, D]
    x = jnp.pad(x, ((0, 0), (0, r_pad - n_rows), (0, 0)))          # [G, R, D]

    out = pl.pallas_call(
        _make_kernel(num_pairs),
        out_shape=jax.ShapeDtypeStruct(
            (gcn_num, num_pairs, fix_size, fix_size), jnp.float32),
        grid_spec=pltpu.PrefetchScalarGridSpec(
            num_scalar_prefetch=0,
            grid=(gcn_num,),
            in_specs=[
                pl.BlockSpec((None, r_pad, dim), lambda g: (g, 0, 0)),
                pl.BlockSpec((num_pairs, fix_size, r_pad), lambda g: (0, 0, 0)),
                pl.BlockSpec((num_pairs, fix_size, r_pad), lambda g: (0, 0, 0)),
            ],
            out_specs=pl.BlockSpec((None, num_pairs, fix_size, fix_size),
                                   lambda g: (g, 0, 0, 0)),
        ),
        compiler_params=pltpu.CompilerParams(
            dimension_semantics=("parallel",)),
    )(x, t1, t2)

    # torch: interpolate -> [1,1,F,F]; .squeeze().unsqueeze(0) -> [1,F,F];
    # stack over pairs then over gcn layers -> [G, P, 1, F, F]
    return out[:, :, None, :, :]


# --------------------------- pure-JAX reference ------------------------------
def _bilinear_resize_2d_ref(img, dst_size, align_corners):
    """Direct gather + lerp 2-D bilinear resize (matches F.interpolate)."""
    src = img.shape[0]
    i0, i1, w0, w1 = _source_index_weights(src, dst_size, align_corners)
    w0r, w1r = jnp.asarray(w0)[:, None], jnp.asarray(w1)[:, None]
    rows = img[i0, :] * w0r + img[i1, :] * w1r           # resize axis 0
    w0c, w1c = jnp.asarray(w0)[None, :], jnp.asarray(w1)[None, :]
    return rows[:, i0] * w0c + rows[:, i1] * w1c          # resize axis 1


def _reference(inputs, ind_list, *, fix_size, padding_value, align_corners):
    """Pure-JAX replica of GraphConvolutionCollector.forward (bilinear mode)."""
    num_pairs = len(ind_list) // 2
    outs = []
    for x in inputs:
        x = jnp.asarray(x, jnp.float32)
        pair_outs = []
        for p in range(num_pairs):
            a0, a1 = ind_list[2 * p]
            b0, b1 = ind_list[2 * p + 1]
            g1, g2 = x[a0:a1], x[b0:b1]
            m = max(a1 - a0, b1 - b0)
            g1p = jnp.pad(g1, ((0, m - (a1 - a0)), (0, 0)),
                          constant_values=padding_value)
            g2p = jnp.pad(g2, ((0, m - (b1 - b0)), (0, 0)),
                          constant_values=padding_value)
            sim = jnp.matmul(g1p, g2p.T, precision=jax.lax.Precision.HIGHEST)
            res = _bilinear_resize_2d_ref(sim, fix_size, align_corners)
            pair_outs.append(res[None])                  # [1, F, F]
        outs.append(jnp.stack(pair_outs))                # [P, 1, F, F]
    return jnp.stack(outs)                               # [G, P, 1, F, F]


if __name__ == "__main__":
    # module config: gcn_num=2, fix_size=16, mode=0 ('bilinear'),
    #                padding_value=0, align_corners=False
    GCN_NUM = 2
    D = 32                      # node embedding width per gcn layer
    FIX_SIZE = 16
    MODE = 0                    # 'bilinear'
    PADDING_VALUE = 0.0
    ALIGN_CORNERS = False
    GRAPH_SIZES = [11, 7, 13, 9]        # 4 graphs -> 2 graph pairs

    offsets = np.cumsum([0] + GRAPH_SIZES)
    ind_list = [(int(offsets[i]), int(offsets[i + 1]))
                for i in range(len(GRAPH_SIZES))]
    total_nodes = int(offsets[-1])

    key = jax.random.PRNGKey(0)
    keys = jax.random.split(key, GCN_NUM)
    inputs = [jax.random.normal(keys[g], (total_nodes, D), jnp.float32)
              for g in range(GCN_NUM)]

    out = graph_convolution_collector_forward(
        inputs, ind_list, gcn_num=GCN_NUM, fix_size=FIX_SIZE, mode=MODE,
        padding_value=PADDING_VALUE, align_corners=ALIGN_CORNERS)
    out = jax.block_until_ready(out)

    ref = _reference(inputs, ind_list, fix_size=FIX_SIZE,
                     padding_value=PADDING_VALUE, align_corners=ALIGN_CORNERS)
    ref = jax.block_until_ready(ref)

    expected_shape = (GCN_NUM, len(GRAPH_SIZES) // 2, 1, FIX_SIZE, FIX_SIZE)
    assert out.shape == ref.shape == expected_shape, (out.shape, ref.shape)
    np.testing.assert_allclose(np.asarray(out), np.asarray(ref),
                               rtol=1e-3, atol=1e-3)
    print("KERNEL_OK")
</pallas_src>

<mosaic_0001>
module attributes {stable_mosaic.version = 11 : i64} {
  func.func @kernel(%arg0: i32, %arg1: memref<1x48x32xf32, #tpu.memory_space<vmem>>, %arg2: memref<2x16x48xf32, #tpu.memory_space<vmem>>, %arg3: memref<2x16x48xf32, #tpu.memory_space<vmem>>, %arg4: memref<1x2x16x16xf32, #tpu.memory_space<vmem>>) attributes {dimension_semantics = [#tpu.dimension_semantics<parallel>], iteration_bounds = array<i64: 2>, scalar_prefetch = 0 : i64, scratch_operands = 0 : i64, tpu.core_type = #tpu.core_type<tc>, window_params = [{transform_indices = @transform_0, window_bounds = array<i64: 1, 48, 32>}, {pipeline_mode = #tpu.pipeline_mode<synchronous>, transform_indices = @transform_1, window_bounds = array<i64: 2, 16, 48>}, {pipeline_mode = #tpu.pipeline_mode<synchronous>, transform_indices = @transform_2, window_bounds = array<i64: 2, 16, 48>}, {transform_indices = @transform_3, window_bounds = array<i64: 1, 2, 16, 16>}]} {
    %c0 = arith.constant 0 : index
    %c0_0 = arith.constant 0 : index
    %c0_1 = arith.constant 0 : index
    %0 = vector.load %arg1[%c0, %c0_0, %c0_1] : memref<1x48x32xf32, #tpu.memory_space<vmem>>, vector<1x48x32xf32>
    %1 = vector.shape_cast %0 : vector<1x48x32xf32> to vector<48x32xf32>
    %c0_2 = arith.constant 0 : index
    %c0_3 = arith.constant 0 : index
    %c0_4 = arith.constant 0 : index
    %2 = vector.load %arg2[%c0_2, %c0_3, %c0_4] : memref<2x16x48xf32, #tpu.memory_space<vmem>>, vector<1x16x48xf32>
    %3 = vector.shape_cast %2 : vector<1x16x48xf32> to vector<16x48xf32>
    %cst = arith.constant dense<0.000000e+00> : vector<16x32xf32>
    %4 = tpu.matmul %3, %1, %cst {dimension_numbers = #tpu.dot_dimension_numbers<[1], [0], [0], [1], [0, 0, 1, 1], [], []>, precision = #tpu.contract_precision<fp32>} : vector<16x48xf32>, vector<48x32xf32>, vector<16x32xf32> -> vector<16x32xf32>
    %c0_5 = arith.constant 0 : index
    %c0_6 = arith.constant 0 : index
    %c0_7 = arith.constant 0 : index
    %5 = vector.load %arg3[%c0_5, %c0_6, %c0_7] : memref<2x16x48xf32, #tpu.memory_space<vmem>>, vector<1x16x48xf32>
    %6 = vector.shape_cast %5 : vector<1x16x48xf32> to vector<16x48xf32>
    %cst_8 = arith.constant dense<0.000000e+00> : vector<16x32xf32>
    %7 = tpu.matmul %6, %1, %cst_8 {dimension_numbers = #tpu.dot_dimension_numbers<[1], [0], [0], [1], [0, 0, 1, 1], [], []>, precision = #tpu.contract_precision<fp32>} : vector<16x48xf32>, vector<48x32xf32>, vector<16x32xf32> -> vector<16x32xf32>
    %cst_9 = arith.constant dense<0.000000e+00> : vector<16x16xf32>
    %8 = tpu.matmul %4, %7, %cst_9 {dimension_numbers = #tpu.dot_dimension_numbers<[1], [1], [0], [0], [0, 0, 1, 0], [], []>, precision = #tpu.contract_precision<fp32>} : vector<16x32xf32>, vector<16x32xf32>, vector<16x16xf32> -> vector<16x16xf32>
    %c0_10 = arith.constant 0 : index
    %c0_11 = arith.constant 0 : index
    %c0_12 = arith.constant 0 : index
    %c0_13 = arith.constant 0 : index
    %9 = vector.load %arg4[%c0_10, %c0_11, %c0_12, %c0_13] : memref<1x2x16x16xf32, #tpu.memory_space<vmem>>, vector<1x1x16x16xf32>
    %10 = vector.shape_cast %9 : vector<1x1x16x16xf32> to vector<16x16xf32>
    %11 = vector.shape_cast %8 : vector<16x16xf32> to vector<1x1x16x16xf32>
    tpu.vector_store %arg4[%c0_10, %c0_11, %c0_12, %c0_13], %11 {strides = array<i32>} : memref<1x2x16x16xf32, #tpu.memory_space<vmem>>, vector<1x1x16x16xf32>,
    %c1 = arith.constant 1 : index
    %c0_14 = arith.constant 0 : index
    %c0_15 = arith.constant 0 : index
    %12 = vector.load %arg2[%c1, %c0_14, %c0_15] : memref<2x16x48xf32, #tpu.memory_space<vmem>>, vector<1x16x48xf32>
    %13 = vector.shape_cast %12 : vector<1x16x48xf32> to vector<16x48xf32>
    %cst_16 = arith.constant dense<0.000000e+00> : vector<16x32xf32>
    %14 = tpu.matmul %13, %1, %cst_16 {dimension_numbers = #tpu.dot_dimension_numbers<[1], [0], [0], [1], [0, 0, 1, 1], [], []>, precision = #tpu.contract_precision<fp32>} : vector<16x48xf32>, vector<48x32xf32>, vector<16x32xf32> -> vector<16x32xf32>
    %c1_17 = arith.constant 1 : index
    %c0_18 = arith.constant 0 : index
    %c0_19 = arith.constant 0 : index
    %15 = vector.load %arg3[%c1_17, %c0_18, %c0_19] : memref<2x16x48xf32, #tpu.memory_space<vmem>>, vector<1x16x48xf32>
    %16 = vector.shape_cast %15 : vector<1x16x48xf32> to vector<16x48xf32>
    %cst_20 = arith.constant dense<0.000000e+00> : vector<16x32xf32>
    %17 = tpu.matmul %16, %1, %cst_20 {dimension_numbers = #tpu.dot_dimension_numbers<[1], [0], [0], [1], [0, 0, 1, 1], [], []>, precision = #tpu.contract_precision<fp32>} : vector<16x48xf32>, vector<48x32xf32>, vector<16x32xf32> -> vector<16x32xf32>
    %cst_21 = arith.constant dense<0.000000e+00> : vector<16x16xf32>
    %18 = tpu.matmul %14, %17, %cst_21 {dimension_numbers = #tpu.dot_dimension_numbers<[1], [1], [0], [0], [0, 0, 1, 0], [], []>, precision = #tpu.contract_precision<fp32>} : vector<16x32xf32>, vector<16x32xf32>, vector<16x16xf32> -> vector<16x16xf32>
    %c0_22 = arith.constant 0 : index
    %c1_23 = arith.constant 1 : index
    %c0_24 = arith.constant 0 : index
    %c0_25 = arith.constant 0 : index
    %19 = vector.load %arg4[%c0_22, %c1_23, %c0_24, %c0_25] : memref<1x2x16x16xf32, #tpu.memory_space<vmem>>, vector<1x1x16x16xf32>
    %20 = vector.shape_cast %19 : vector<1x1x16x16xf32> to vector<16x16xf32>
    %21 = vector.shape_cast %18 : vector<16x16xf32> to vector<1x1x16x16xf32>
    tpu.vector_store %arg4[%c0_22, %c1_23, %c0_24, %c0_25], %21 {strides = array<i32>} : memref<1x2x16x16xf32, #tpu.memory_space<vmem>>, vector<1x1x16x16xf32>,
    return
  }
  func.func @transform_0(%arg0: i32) -> (i32, i32, i32) {
    %c0_i32 = arith.constant 0 : i32
    %c0_i32_0 = arith.constant 0 : i32
    %c0_i32_1 = arith.constant 0 : i32
    return %arg0, %c0_i32, %c0_i32_0 : i32, i32, i32
  }
  func.func @transform_1(%arg0: i32) -> (i32, i32, i32) {
    %c0_i32 = arith.constant 0 : i32
    %c0_i32_0 = arith.constant 0 : i32
    %c0_i32_1 = arith.constant 0 : i32
    %c0_i32_2 = arith.constant 0 : i32
    return %c0_i32, %c0_i32_0, %c0_i32_1 : i32, i32, i32
  }
  func.func @transform_2(%arg0: i32) -> (i32, i32, i32) {
    %c0_i32 = arith.constant 0 : i32
    %c0_i32_0 = arith.constant 0 : i32
    %c0_i32_1 = arith.constant 0 : i32
    %c0_i32_2 = arith.constant 0 : i32
    return %c0_i32, %c0_i32_0, %c0_i32_1 : i32, i32, i32
  }
  func.func @transform_3(%arg0: i32) -> (i32, i32, i32, i32) {
    %c0_i32 = arith.constant 0 : i32
    %c0_i32_0 = arith.constant 0 : i32
    %c0_i32_1 = arith.constant 0 : i32
    %c0_i32_2 = arith.constant 0 : i32
    return %arg0, %c0_i32, %c0_i32_0, %c0_i32_1 : i32, i32, i32, i32
  }
}

</mosaic_0001>

<llo_original>
// kernel: tpu_custom_call.1
$region0: #{tpu_custom_call.1}
  #allocation0 [shape = 'u32[]', space=smem, size = 0x4, offset = 0x4, fixed_abs, tag = 'smem constant byte address 0x4 - core index']
  #allocation1 [shape = 'u32[72,128]{1,0:T(1,128)}', space=vmem, size = 0x9000, scoped, tag = 'internal scratch']
  %s0 = inlined_call_operand.vmem [shape: f32[2,48,32], index: 0, kind: input, shape index: {}]
  %s1 = inlined_call_operand.vmem [shape: f32[2,16,48], index: 1, kind: input, shape index: {}]
  %s2 = inlined_call_operand.vmem [shape: f32[2,16,48], index: 2, kind: input, shape index: {}]
  %s3 = inlined_call_operand.hbm [shape: f32[2,2,16,16], index: 3, kind: output, shape index: {}]
  %s4 = sld [smem:[#allocation0]]
  $region45: #{tpu_custom_call.1} parent=0
    _
  %s6 = ssub.s32 1, %s4
  %s7 = scalar_select 0, %s6, %s4
  $region1: #{tpu_custom_call.1} parent=0
    #allocation2 [shape = 'u8[32768]{0}', space=vmem, size = 0x8000, scoped, tag = 'output window, operand 0']
    #allocation3 [shape = 's32[2]{0}', space=sflag, size = 0x8, scoped, tag = 'scoped memory for tpu_custom_call.1']
    %8 = vsyncpa [#allocation3], 0
    %s9 = scalar_lea.sflag [#allocation3], 1
    %10 = vsyncpa %s9, 0
    loop: start=0, step=1, limit=4
    $region2: #{tpu_custom_call.1} parent=1 // loop_pre_header
      _
    $region3: #{tpu_custom_call.1} parent=1 // loop_header
      %s12 = sphi 0, %s16
      %p13 = scmp.ge.s32.totalorder %s12, 4
      %s22 = sphi 0, %s24
      %s25 = sphi 0, %s22
      %s26 = sphi 0, %s25
      %s42 = sphi 0, %s26
      %s46 = sphi 0, %s46
      %s48 = sphi 0, %s46
      %s49 = sphi 0, %s48
      %s63 = sphi 0, %s49
      %s67 = sphi 0, %s67
      %s69 = sphi 0, %s67
      %s70 = sphi 0, %s69
      %s84 = sphi 0, %s70
      %s90 = sphi 0, %s92
      %s93 = sphi 0, %s90
      %s94 = sphi 0, %s93
      %s110 = sphi 0, %s94
    $region4: #{tpu_custom_call.1} parent=1 // loop_header_branch
      %15 = sbr.rel (%p13) target = $region8
    $region5: #{tpu_custom_call.1} parent=1 // loop_body
      %s17 = ssub.s32 %s12, 1
      %s18 = ssub.s32 %s12, 2
      %s19 = sadd.s32 %s12, 1
      %s20 = ssub.s32 %s12, %s19
      %p21 = scmp.eq.s32.totalorder %s20, 0
      %s23 = sadd.s32 %s22, 1
      %s24 = scalar_select %p21, %s22, %s23
      %p27 = pneg %p21
      %p28 = scmp.eq.s32.totalorder %s12, 1
      %p29 = por %p27, %p28
      %p30 = scmp.ne.s32.totalorder %s22, %s25
      %p31 = scmp.eq.s32.totalorder %s12, 0
      %p32 = por %p30, %p31
      %p33 = scmp.ne.s32.totalorder %s22, %s25
      %p34 = scmp.eq.s32.totalorder %s17, 1
      %p35 = por %p33, %p34
      %p36 = scmp.ne.s32.totalorder %s25, %s26
      %p37 = scmp.eq.s32.totalorder %s17, 0
      %p38 = por %p36, %p37
      %p39 = scmp.ne.s32.totalorder %s25, %s26
      %p40 = scmp.eq.s32.totalorder %s18, 1
      %p41 = por %p39, %p40
      %p43 = scmp.ne.s32.totalorder %s26, %s42
      %p44 = scmp.eq.s32.totalorder %s18, 0
      %p45 = por %p43, %p44
      %s47 = sadd.s32 %s46, 1
      %p50 = scmp.eq.s32.totalorder %s12, 1
      %p51 = scmp.ne.s32.totalorder %s46, %s48
      %p52 = scmp.eq.s32.totalorder %s12, 0
      %p53 = por %p51, %p52
      %p54 = scmp.ne.s32.totalorder %s46, %s48
      %p55 = scmp.eq.s32.totalorder %s17, 1
      %p56 = por %p54, %p55
      %p57 = scmp.ne.s32.totalorder %s48, %s49
      %p58 = scmp.eq.s32.totalorder %s17, 0
      %p59 = por %p57, %p58
      %p60 = scmp.ne.s32.totalorder %s48, %s49
      %p61 = scmp.eq.s32.totalorder %s18, 1
      %p62 = por %p60, %p61
      %p64 = scmp.ne.s32.totalorder %s49, %s63
      %p65 = scmp.eq.s32.totalorder %s18, 0
      %p66 = por %p64, %p65
      %s68 = sadd.s32 %s67, 1
      %p71 = scmp.eq.s32.totalorder %s12, 1
      %p72 = scmp.ne.s32.totalorder %s67, %s69
      %p73 = scmp.eq.s32.totalorder %s12, 0
      %p74 = por %p72, %p73
      %p75 = scmp.ne.s32.totalorder %s67, %s69
      %p76 = scmp.eq.s32.totalorder %s17, 1
      %p77 = por %p75, %p76
      %p78 = scmp.ne.s32.totalorder %s69, %s70
      %p79 = scmp.eq.s32.totalorder %s17, 0
      %p80 = por %p78, %p79
      %p81 = scmp.ne.s32.totalorder %s69, %s70
      %p82 = scmp.eq.s32.totalorder %s18, 1
      %p83 = por %p81, %p82
      %p85 = scmp.ne.s32.totalorder %s70, %s84
      %p86 = scmp.eq.s32.totalorder %s18, 0
      %p87 = por %p85, %p86
      %s88 = ssub.s32 %s12, %s19
      %p89 = scmp.eq.s32.totalorder %s88, 0
      %s91 = sadd.s32 %s90, 1
      %s92 = scalar_select %p89, %s90, %s91
      %p95 = pneg %p89
      %p96 = scmp.eq.s32.totalorder %s12, 1
      %p97 = por %p95, %p96
      %p98 = scmp.ne.s32.totalorder %s90, %s93
      %p99 = scmp.eq.s32.totalorder %s12, 0
      %p100 = por %p98, %p99
      %p101 = scmp.ne.s32.totalorder %s90, %s93
      %p102 = scmp.eq.s32.totalorder %s17, 1
      %p103 = por %p101, %p102
      %p104 = scmp.ne.s32.totalorder %s93, %s94
      %p105 = scmp.eq.s32.totalorder %s17, 0
      %p106 = por %p104, %p105
      %p107 = scmp.ne.s32.totalorder %s93, %s94
      %p108 = scmp.eq.s32.totalorder %s18, 1
      %p109 = por %p107, %p108
      %p111 = scmp.ne.s32.totalorder %s94, %s110
      %p112 = scmp.eq.s32.totalorder %s18, 0
      %p113 = por %p111, %p112
      %p114 = scmp.le.s32.totalorder 1, %s12
      %p115 = scmp.lt.s32.totalorder %s12, 3
      %p116 = pnand %p114, %p115
      %p117 = pneg %p116
      // Predicated region
      $region9: #{tpu_custom_call.1} parent=5 // pred_check
        _
      $region10: #{tpu_custom_call.1} parent=5 // pred_check_branch
        %119 = sbr.rel (%p116) target = $region12
      $region11: #{tpu_custom_call.1} parent=5 // pred_region
        %s120 = ssub.s32 %s12, 1
        // Predicated region
        $region13: #{tpu_custom_call.1} parent=11 // pred_check
          %p121 = pneg %p59
        $region14: #{tpu_custom_call.1} parent=11 // pred_check_branch
          %123 = sbr.rel (%p121) target = $region16
        $region15: #{tpu_custom_call.1} parent=11 // pred_region
          _
        $region16: #{tpu_custom_call.1} parent=11 // pred_fallthru
          _
        // Predicated region
        $region17: #{tpu_custom_call.1} parent=11 // pred_check
          %p124 = pneg %p80
        $region18: #{tpu_custom_call.1} parent=11 // pred_check_branch
          %126 = sbr.rel (%p124) target = $region20
        $region19: #{tpu_custom_call.1} parent=11 // pred_region
          _
        $region20: #{tpu_custom_call.1} parent=11 // pred_fallthru
          _
      $region12: #{tpu_custom_call.1} parent=5 // pred_fallthru
        _
      %p127 = scmp.lt.s32.totalorder %s12, 2
      // Predicated region
      $region21: #{tpu_custom_call.1} parent=5 // pred_check
        %p128 = pneg %p127
      $region22: #{tpu_custom_call.1} parent=5 // pred_check_branch
        %130 = sbr.rel (%p128) target = $region24
      $region23: #{tpu_custom_call.1} parent=5 // pred_region
        // Predicated region
        $region25: #{tpu_custom_call.1} parent=23 // pred_check
          %p131 = pneg %p32
        $region26: #{tpu_custom_call.1} parent=23 // pred_check_branch
          %133 = sbr.rel (%p131) target = $region28
        $region27: #{tpu_custom_call.1} parent=23 // pred_region
          %p134 = scmp.lt.s32.totalorder %s12, 1
          %s135 = scalar_select %p134, %s12, 1
          %s136 = smul.addr %s135, 6
          %s137 = smul.addr %s136, 8
          %s138 = scalar_lea.vmem %s0, %s137
        $region28: #{tpu_custom_call.1} parent=23 // pred_fallthru
          _
      $region24: #{tpu_custom_call.1} parent=5 // pred_fallthru
        _
      %p139 = scmp.le.s32.totalorder 1, %s12
      %p140 = scmp.lt.s32.totalorder %s12, 3
      %p141 = pnand %p139, %p140
      %p142 = pneg %p141
      // Predicated region
      $region29: #{tpu_custom_call.1} parent=5 // pred_check
        _
      $region30: #{tpu_custom_call.1} parent=5 // pred_check_branch
        %144 = sbr.rel (%p141) target = $region32
      $region31: #{tpu_custom_call.1} parent=5 // pred_region
        %s145 = ssub.s32 %s12, 1
        %p146 = scmp.lt.s32.totalorder %s17, 1
        %s147 = scalar_select %p146, %s17, 1
        %s148 = smul.addr %s147, 6
        %s149 = smul.addr %s148, 8
        %s150 = scalar_lea.vmem %s0, %s149
        %p151 = pneg %p38
        %p152 = pneg %p35
        %p153 = pneg %p59
        %p154 = pneg %p56
        %p155 = pneg %p80
        %p156 = pneg %p77
        %p157 = pneg %p106
        %p158 = pneg %p103
        %s159 = sand.u32 %s93, 1
        %s160 = scalar_lea.sflag [#allocation3], %s159
        %s161 = sand.u32 %s93, 1
        %s162 = smul.addr %s161, 32
        %s163 = scalar_lea.vmem [#allocation2], %s162
        %p164 = scmp.lt.s32.totalorder %s17, 1
        %s165 = scalar_select %p164, %s17, 1
        %s166 = smul.addr %s165, 6
        %s167 = smul.addr %s166, 8
        %s168 = scalar_lea.vmem %s0, %s167
        %v169 = vld [vmem:[%s168] sm:$0xff]
        %v170 = vld [vmem:[%s168 + $0x8] sm:$0xff]
        %v171 = vld [vmem:[%s168 + $0x10] sm:$0xff]
        %v172 = vld [vmem:[%s168 + $0x18] sm:$0xff]
        %v173 = vld [vmem:[%s168 + $0x20] sm:$0xff]
        %v174 = vld [vmem:[%s168 + $0x28] sm:$0xff]
        %v175 = vld [vmem:[%s1] sm:$0xff]
        %v176 = vld [vmem:[%s1 + $0x8] sm:$0xff]
        %vm177 = vcmask 392192
        %v179 = vsel %vm177, %v175, 0
        %v182 = vsel %vm177, %v176, 0
        %184 = vmatpush.msra.mxu0 0.0
        %185 = vmatpush.msra.mxu0 0.0
        %186 = vmatpush.msra.mxu0 0.0
        %187 = vmatpush.msra.mxu0 0.0
        %188 = vmatpush.msra.mxu0 0.0
        %189 = vmatpush.msra.mxu0 0.0
        %190 = vmatpush.msra.mxu0 0.0
        %191 = vmatpush.msra.mxu0 0.0
        %192 = vmatpush.msra.mxu0 0.0
        %193 = vmatpush.msra.mxu0 0.0
        %v194 = vand.u32 %v174, 4294901760
        %195 = vmatpush.msra.mxu0 %v194
        %v196 = vand.u32 %v173, 4294901760
        %197 = vmatpush.msra.mxu0 %v196
        %v198 = vand.u32 %v172, 4294901760
        %199 = vmatpush.msra.mxu0 %v198
        %v200 = vand.u32 %v171, 4294901760
        %201 = vmatpush.msra.mxu0 %v200
        %v202 = vand.u32 %v170, 4294901760
        %203 = vmatpush.msra.mxu0 %v202
        %v204 = vand.u32 %v169, 4294901760
        %205 = vmatpush.msra.mxu0 %v204
        %v206 = vand.u32 %v179, 4294901760
        %v207 = vsub.f32 %v179, %v206
        %v208 = vand.u32 %v207, 4294901760
        %v209 = vsub.f32 %v207, %v208
        %v210 = vand.u32 %v209, 4294901760
        %211 = vmatmul.f32.gmra.mxu0 %v210
        %v212 = vpop.f32.mrf.mxu0
        %v213 = vadd.f32 0.0, %v212
        %v214 = vand.u32 %v182, 4294901760
        %v215 = vsub.f32 %v182, %v214
        %v216 = vand.u32 %v215, 4294901760
        %v217 = vsub.f32 %v215, %v216
        %v218 = vand.u32 %v217, 4294901760
        %219 = vmatmul.f32.gmra.mxu0 %v218
        %v220 = vpop.f32.mrf.mxu0
        %v221 = vadd.f32 0.0, %v220
        %222 = vdwg.mxu0
        %223 = vmatpush.msra.mxu0 0.0
        %224 = vmatpush.msra.mxu0 0.0
        %225 = vmatpush.msra.mxu0 0.0
        %226 = vmatpush.msra.mxu0 0.0
        %227 = vmatpush.msra.mxu0 0.0
        %228 = vmatpush.msra.mxu0 0.0
        %229 = vmatpush.msra.mxu0 0.0
        %230 = vmatpush.msra.mxu0 0.0
        %231 = vmatpush.msra.mxu0 0.0
        %232 = vmatpush.msra.mxu0 0.0
        %v233 = vand.u32 %v174, 4294901760
        %v234 = vsub.f32 %v174, %v233
        %v235 = vand.u32 %v234, 4294901760
        %v236 = vsub.f32 %v234, %v235
        %v237 = vand.u32 %v236, 4294901760
        %238 = vmatpush.msra.mxu0 %v237
        %v239 = vand.u32 %v173, 4294901760
        %v240 = vsub.f32 %v173, %v239
        %v241 = vand.u32 %v240, 4294901760
        %v242 = vsub.f32 %v240, %v241
        %v243 = vand.u32 %v242, 4294901760
        %244 = vmatpush.msra.mxu0 %v243
        %v245 = vand.u32 %v172, 4294901760
        %v246 = vsub.f32 %v172, %v245
        %v247 = vand.u32 %v246, 4294901760
        %v248 = vsub.f32 %v246, %v247
        %v249 = vand.u32 %v248, 4294901760
        %250 = vmatpush.msra.mxu0 %v249
        %v251 = vand.u32 %v171, 4294901760
        %v252 = vsub.f32 %v171, %v251
        %v253 = vand.u32 %v252, 4294901760
        %v254 = vsub.f32 %v252, %v253
        %v255 = vand.u32 %v254, 4294901760
        %256 = vmatpush.msra.mxu0 %v255
        %v257 = vand.u32 %v170, 4294901760
        %v258 = vsub.f32 %v170, %v257
        %v259 = vand.u32 %v258, 4294901760
        %v260 = vsub.f32 %v258, %v259
        %v261 = vand.u32 %v260, 4294901760
        %262 = vmatpush.msra.mxu0 %v261
        %v263 = vand.u32 %v169, 4294901760
        %v264 = vsub.f32 %v169, %v263
        %v265 = vand.u32 %v264, 4294901760
        %v266 = vsub.f32 %v264, %v265
        %v267 = vand.u32 %v266, 4294901760
        %268 = vmatpush.msra.mxu0 %v267
        %v269 = vand.u32 %v179, 4294901760
        %270 = vmatmul.f32.gmra.mxu0 %v269
        %v271 = vpop.f32.mrf.mxu0
        %v272 = vadd.f32 %v213, %v271
        %v273 = vand.u32 %v182, 4294901760
        %274 = vmatmul.f32.gmra.mxu0 %v273
        %v275 = vpop.f32.mrf.mxu0
        %v276 = vadd.f32 %v221, %v275
        %277 = vdwg.mxu0
        %278 = vmatpush.msra.mxu0 0.0
        %279 = vmatpush.msra.mxu0 0.0
        %280 = vmatpush.msra.mxu0 0.0
        %281 = vmatpush.msra.mxu0 0.0
        %282 = vmatpush.msra.mxu0 0.0
        %283 = vmatpush.msra.mxu0 0.0
        %284 = vmatpush.msra.mxu0 0.0
        %285 = vmatpush.msra.mxu0 0.0
        %286 = vmatpush.msra.mxu0 0.0
        %287 = vmatpush.msra.mxu0 0.0
        %v288 = vand.u32 %v174, 4294901760
        %v289 = vsub.f32 %v174, %v288
        %290 = vmatpush.msra.mxu0 %v289
        %v291 = vand.u32 %v173, 4294901760
        %v292 = vsub.f32 %v173, %v291
        %293 = vmatpush.msra.mxu0 %v292
        %v294 = vand.u32 %v172, 4294901760
        %v295 = vsub.f32 %v172, %v294
        %296 = vmatpush.msra.mxu0 %v295
        %v297 = vand.u32 %v171, 4294901760
        %v298 = vsub.f32 %v171, %v297
        %299 = vmatpush.msra.mxu0 %v298
        %v300 = vand.u32 %v170, 4294901760
        %v301 = vsub.f32 %v170, %v300
        %302 = vmatpush.msra.mxu0 %v301
        %v303 = vand.u32 %v169, 4294901760
        %v304 = vsub.f32 %v169, %v303
        %305 = vmatpush.msra.mxu0 %v304
        %v306 = vand.u32 %v179, 4294901760
        %v307 = vsub.f32 %v179, %v306
        %308 = vmatmul.f32.gmra.mxu0 %v307
        %v309 = vpop.f32.mrf.mxu0
        %v310 = vadd.f32 %v272, %v309
        %v311 = vand.u32 %v182, 4294901760
        %v312 = vsub.f32 %v182, %v311
        %313 = vmatmul.f32.gmra.mxu0 %v312
        %v314 = vpop.f32.mrf.mxu0
        %v315 = vadd.f32 %v276, %v314
        %316 = vdwg.mxu0
        %317 = vmatpush.msra.mxu0 0.0
        %318 = vmatpush.msra.mxu0 0.0
        %319 = vmatpush.msra.mxu0 0.0
        %320 = vmatpush.msra.mxu0 0.0
        %321 = vmatpush.msra.mxu0 0.0
        %322 = vmatpush.msra.mxu0 0.0
        %323 = vmatpush.msra.mxu0 0.0
        %324 = vmatpush.msra.mxu0 0.0
        %325 = vmatpush.msra.mxu0 0.0
        %326 = vmatpush.msra.mxu0 0.0
        %v327 = vand.u32 %v174, 4294901760
        %328 = vmatpush.msra.mxu0 %v327
        %v329 = vand.u32 %v173, 4294901760
        %330 = vmatpush.msra.mxu0 %v329
        %v331 = vand.u32 %v172, 4294901760
        %332 = vmatpush.msra.mxu0 %v331
        %v333 = vand.u32 %v171, 4294901760
        %334 = vmatpush.msra.mxu0 %v333
        %v335 = vand.u32 %v170, 4294901760
        %336 = vmatpush.msra.mxu0 %v335
        %v337 = vand.u32 %v169, 4294901760
        %338 = vmatpush.msra.mxu0 %v337
        %v339 = vand.u32 %v179, 4294901760
        %v340 = vsub.f32 %v179, %v339
        %v341 = vand.u32 %v340, 4294901760
        %342 = vmatmul.f32.gmra.mxu0 %v341
        %v343 = vpop.f32.mrf.mxu0
        %v344 = vadd.f32 %v310, %v343
        %v345 = vand.u32 %v182, 4294901760
        %v346 = vsub.f32 %v182, %v345
        %v347 = vand.u32 %v346, 4294901760
        %348 = vmatmul.f32.gmra.mxu0 %v347
        %v349 = vpop.f32.mrf.mxu0
        %v350 = vadd.f32 %v315, %v349
        %351 = vdwg.mxu0
        %352 = vmatpush.msra.mxu0 0.0
        %353 = vmatpush.msra.mxu0 0.0
        %354 = vmatpush.msra.mxu0 0.0
        %355 = vmatpush.msra.mxu0 0.0
        %356 = vmatpush.msra.mxu0 0.0
        %357 = vmatpush.msra.mxu0 0.0
        %358 = vmatpush.msra.mxu0 0.0
        %359 = vmatpush.msra.mxu0 0.0
        %360 = vmatpush.msra.mxu0 0.0
        %361 = vmatpush.msra.mxu0 0.0
        %v362 = vand.u32 %v174, 4294901760
        %v363 = vsub.f32 %v174, %v362
        %v364 = vand.u32 %v363, 4294901760
        %365 = vmatpush.msra.mxu0 %v364
        %v366 = vand.u32 %v173, 4294901760
        %v367 = vsub.f32 %v173, %v366
        %v368 = vand.u32 %v367, 4294901760
        %369 = vmatpush.msra.mxu0 %v368
        %v370 = vand.u32 %v172, 4294901760
        %v371 = vsub.f32 %v172, %v370
        %v372 = vand.u32 %v371, 4294901760
        %373 = vmatpush.msra.mxu0 %v372
        %v374 = vand.u32 %v171, 4294901760
        %v375 = vsub.f32 %v171, %v374
        %v376 = vand.u32 %v375, 4294901760
        %377 = vmatpush.msra.mxu0 %v376
        %v378 = vand.u32 %v170, 4294901760
        %v379 = vsub.f32 %v170, %v378
        %v380 = vand.u32 %v379, 4294901760
        %381 = vmatpush.msra.mxu0 %v380
        %v382 = vand.u32 %v169, 4294901760
        %v383 = vsub.f32 %v169, %v382
        %v384 = vand.u32 %v383, 4294901760
        %385 = vmatpush.msra.mxu0 %v384
        %v386 = vand.u32 %v179, 4294901760
        %387 = vmatmul.f32.gmra.mxu0 %v386
        %v388 = vpop.f32.mrf.mxu0
        %v389 = vadd.f32 %v344, %v388
        %v390 = vand.u32 %v182, 4294901760
        %391 = vmatmul.f32.gmra.mxu0 %v390
        %v392 = vpop.f32.mrf.mxu0
        %v393 = vadd.f32 %v350, %v392
        %394 = vdwg.mxu0
        %395 = vmatpush.msra.mxu0 0.0
        %396 = vmatpush.msra.mxu0 0.0
        %397 = vmatpush.msra.mxu0 0.0
        %398 = vmatpush.msra.mxu0 0.0
        %399 = vmatpush.msra.mxu0 0.0
        %400 = vmatpush.msra.mxu0 0.0
        %401 = vmatpush.msra.mxu0 0.0
        %402 = vmatpush.msra.mxu0 0.0
        %403 = vmatpush.msra.mxu0 0.0
        %404 = vmatpush.msra.mxu0 0.0
        %v405 = vand.u32 %v174, 4294901760
        %406 = vmatpush.msra.mxu0 %v405
        %v407 = vand.u32 %v173, 4294901760
        %408 = vmatpush.msra.mxu0 %v407
        %v409 = vand.u32 %v172, 4294901760
        %410 = vmatpush.msra.mxu0 %v409
        %v411 = vand.u32 %v171, 4294901760
        %412 = vmatpush.msra.mxu0 %v411
        %v413 = vand.u32 %v170, 4294901760
        %414 = vmatpush.msra.mxu0 %v413
        %v415 = vand.u32 %v169, 4294901760
        %416 = vmatpush.msra.mxu0 %v415
        %v417 = vand.u32 %v179, 4294901760
        %418 = vmatmul.f32.gmra.mxu0 %v417
        %v419 = vpop.f32.mrf.mxu0
        %v420 = vadd.f32 %v389, %v419
        %v421 = vand.u32 %v182, 4294901760
        %422 = vmatmul.f32.gmra.mxu0 %v421
        %v423 = vpop.f32.mrf.mxu0
        %v424 = vadd.f32 %v393, %v423
        %425 = vdwg.mxu0
        %v426 = vld [vmem:[%s2] sm:$0xff]
        %v427 = vld [vmem:[%s2 + $0x8] sm:$0xff]
        %v429 = vsel %vm177, %v426, 0
        %v432 = vsel %vm177, %v427, 0
        %434 = vmatpush.msra.mxu0 0.0
        %435 = vmatpush.msra.mxu0 0.0
        %436 = vmatpush.msra.mxu0 0.0
        %437 = vmatpush.msra.mxu0 0.0
        %438 = vmatpush.msra.mxu0 0.0
        %439 = vmatpush.msra.mxu0 0.0
        %440 = vmatpush.msra.mxu0 0.0
        %441 = vmatpush.msra.mxu0 0.0
        %442 = vmatpush.msra.mxu0 0.0
        %443 = vmatpush.msra.mxu0 0.0
        %v444 = vand.u32 %v174, 4294901760
        %445 = vmatpush.msra.mxu0 %v444
        %v446 = vand.u32 %v173, 4294901760
        %447 = vmatpush.msra.mxu0 %v446
        %v448 = vand.u32 %v172, 4294901760
        %449 = vmatpush.msra.mxu0 %v448
        %v450 = vand.u32 %v171, 4294901760
        %451 = vmatpush.msra.mxu0 %v450
        %v452 = vand.u32 %v170, 4294901760
        %453 = vmatpush.msra.mxu0 %v452
        %v454 = vand.u32 %v169, 4294901760
        %455 = vmatpush.msra.mxu0 %v454
        %v456 = vand.u32 %v429, 4294901760
        %v457 = vsub.f32 %v429, %v456
        %v458 = vand.u32 %v457, 4294901760
        %v459 = vsub.f32 %v457, %v458
        %v460 = vand.u32 %v459, 4294901760
        %461 = vmatmul.f32.gmra.mxu0 %v460
        %v462 = vpop.f32.mrf.mxu0
        %v463 = vadd.f32 0.0, %v462
        %v464 = vand.u32 %v432, 4294901760
        %v465 = vsub.f32 %v432, %v464
        %v466 = vand.u32 %v465, 4294901760
        %v467 = vsub.f32 %v465, %v466
        %v468 = vand.u32 %v467, 4294901760
        %469 = vmatmul.f32.gmra.mxu0 %v468
        %v470 = vpop.f32.mrf.mxu0
        %v471 = vadd.f32 0.0, %v470
        %472 = vdwg.mxu0
        %473 = vmatpush.msra.mxu0 0.0
        %474 = vmatpush.msra.mxu0 0.0
        %475 = vmatpush.msra.mxu0 0.0
        %476 = vmatpush.msra.mxu0 0.0
        %477 = vmatpush.msra.mxu0 0.0
        %478 = vmatpush.msra.mxu0 0.0
        %479 = vmatpush.msra.mxu0 0.0
        %480 = vmatpush.msra.mxu0 0.0
        %481 = vmatpush.msra.mxu0 0.0
        %482 = vmatpush.msra.mxu0 0.0
        %v483 = vand.u32 %v174, 4294901760
        %v484 = vsub.f32 %v174, %v483
        %v485 = vand.u32 %v484, 4294901760
        %v486 = vsub.f32 %v484, %v485
        %v487 = vand.u32 %v486, 4294901760
        %488 = vmatpush.msra.mxu0 %v487
        %v489 = vand.u32 %v173, 4294901760
        %v490 = vsub.f32 %v173, %v489
        %v491 = vand.u32 %v490, 4294901760
        %v492 = vsub.f32 %v490, %v491
        %v493 = vand.u32 %v492, 4294901760
        %494 = vmatpush.msra.mxu0 %v493
        %v495 = vand.u32 %v172, 4294901760
        %v496 = vsub.f32 %v172, %v495
        %v497 = vand.u32 %v496, 4294901760
        %v498 = vsub.f32 %v496, %v497
        %v499 = vand.u32 %v498, 4294901760
        %500 = vmatpush.msra.mxu0 %v499
        %v501 = vand.u32 %v171, 4294901760
        %v502 = vsub.f32 %v171, %v501
        %v503 = vand.u32 %v502, 4294901760
        %v504 = vsub.f32 %v502, %v503
        %v505 = vand.u32 %v504, 4294901760
        %506 = vmatpush.msra.mxu0 %v505
        %v507 = vand.u32 %v170, 4294901760
        %v508 = vsub.f32 %v170, %v507
        %v509 = vand.u32 %v508, 4294901760
        %v510 = vsub.f32 %v508, %v509
        %v511 = vand.u32 %v510, 4294901760
        %512 = vmatpush.msra.mxu0 %v511
        %v513 = vand.u32 %v169, 4294901760
        %v514 = vsub.f32 %v169, %v513
        %v515 = vand.u32 %v514, 4294901760
        %v516 = vsub.f32 %v514, %v515
        %v517 = vand.u32 %v516, 4294901760
        %518 = vmatpush.msra.mxu0 %v517
        %v519 = vand.u32 %v429, 4294901760
        %520 = vmatmul.f32.gmra.mxu0 %v519
        %v521 = vpop.f32.mrf.mxu0
        %v522 = vadd.f32 %v463, %v521
        %v523 = vand.u32 %v432, 4294901760
        %524 = vmatmul.f32.gmra.mxu0 %v523
        %v525 = vpop.f32.mrf.mxu0
        %v526 = vadd.f32 %v471, %v525
        %527 = vdwg.mxu0
        %528 = vmatpush.msra.mxu0 0.0
        %529 = vmatpush.msra.mxu0 0.0
        %530 = vmatpush.msra.mxu0 0.0
        %531 = vmatpush.msra.mxu0 0.0
        %532 = vmatpush.msra.mxu0 0.0
        %533 = vmatpush.msra.mxu0 0.0
        %534 = vmatpush.msra.mxu0 0.0
        %535 = vmatpush.msra.mxu0 0.0
        %536 = vmatpush.msra.mxu0 0.0
        %537 = vmatpush.msra.mxu0 0.0
        %v538 = vand.u32 %v174, 4294901760
        %v539 = vsub.f32 %v174, %v538
        %540 = vmatpush.msra.mxu0 %v539
        %v541 = vand.u32 %v173, 4294901760
        %v542 = vsub.f32 %v173, %v541
        %543 = vmatpush.msra.mxu0 %v542
        %v544 = vand.u32 %v172, 4294901760
        %v545 = vsub.f32 %v172, %v544
        %546 = vmatpush.msra.mxu0 %v545
        %v547 = vand.u32 %v171, 4294901760
        %v548 = vsub.f32 %v171, %v547
        %549 = vmatpush.msra.mxu0 %v548
        %v550 = vand.u32 %v170, 4294901760
        %v551 = vsub.f32 %v170, %v550
        %552 = vmatpush.msra.mxu0 %v551
        %v553 = vand.u32 %v169, 4294901760
        %v554 = vsub.f32 %v169, %v553
        %555 = vmatpush.msra.mxu0 %v554
        %v556 = vand.u32 %v429, 4294901760
        %v557 = vsub.f32 %v429, %v556
        %558 = vmatmul.f32.gmra.mxu0 %v557
        %v559 = vpop.f32.mrf.mxu0
        %v560 = vadd.f32 %v522, %v559
        %v561 = vand.u32 %v432, 4294901760
        %v562 = vsub.f32 %v432, %v561
        %563 = vmatmul.f32.gmra.mxu0 %v562
        %v564 = vpop.f32.mrf.mxu0
        %v565 = vadd.f32 %v526, %v564
        %566 = vdwg.mxu0
        %567 = vmatpush.msra.mxu0 0.0
        %568 = vmatpush.msra.mxu0 0.0
        %569 = vmatpush.msra.mxu0 0.0
        %570 = vmatpush.msra.mxu0 0.0
        %571 = vmatpush.msra.mxu0 0.0
        %572 = vmatpush.msra.mxu0 0.0
        %573 = vmatpush.msra.mxu0 0.0
        %574 = vmatpush.msra.mxu0 0.0
        %575 = vmatpush.msra.mxu0 0.0
        %576 = vmatpush.msra.mxu0 0.0
        %v577 = vand.u32 %v174, 4294901760
        %578 = vmatpush.msra.mxu0 %v577
        %v579 = vand.u32 %v173, 4294901760
        %580 = vmatpush.msra.mxu0 %v579
        %v581 = vand.u32 %v172, 4294901760
        %582 = vmatpush.msra.mxu0 %v581
        %v583 = vand.u32 %v171, 4294901760
        %584 = vmatpush.msra.mxu0 %v583
        %v585 = vand.u32 %v170, 4294901760
        %586 = vmatpush.msra.mxu0 %v585
        %v587 = vand.u32 %v169, 4294901760
        %588 = vmatpush.msra.mxu0 %v587
        %v589 = vand.u32 %v429, 4294901760
        %v590 = vsub.f32 %v429, %v589
        %v591 = vand.u32 %v590, 4294901760
        %592 = vmatmul.f32.gmra.mxu0 %v591
        %v593 = vpop.f32.mrf.mxu0
        %v594 = vadd.f32 %v560, %v593
        %v595 = vand.u32 %v432, 4294901760
        %v596 = vsub.f32 %v432, %v595
        %v597 = vand.u32 %v596, 4294901760
        %598 = vmatmul.f32.gmra.mxu0 %v597
        %v599 = vpop.f32.mrf.mxu0
        %v600 = vadd.f32 %v565, %v599
        %601 = vdwg.mxu0
        %602 = vmatpush.msra.mxu0 0.0
        %603 = vmatpush.msra.mxu0 0.0
        %604 = vmatpush.msra.mxu0 0.0
        %605 = vmatpush.msra.mxu0 0.0
        %606 = vmatpush.msra.mxu0 0.0
        %607 = vmatpush.msra.mxu0 0.0
        %608 = vmatpush.msra.mxu0 0.0
        %609 = vmatpush.msra.mxu0 0.0
        %610 = vmatpush.msra.mxu0 0.0
        %611 = vmatpush.msra.mxu0 0.0
        %v612 = vand.u32 %v174, 4294901760
        %v613 = vsub.f32 %v174, %v612
        %v614 = vand.u32 %v613, 4294901760
        %615 = vmatpush.msra.mxu0 %v614
        %v616 = vand.u32 %v173, 4294901760
        %v617 = vsub.f32 %v173, %v616
        %v618 = vand.u32 %v617, 4294901760
        %619 = vmatpush.msra.mxu0 %v618
        %v620 = vand.u32 %v172, 4294901760
        %v621 = vsub.f32 %v172, %v620
        %v622 = vand.u32 %v621, 4294901760
        %623 = vmatpush.msra.mxu0 %v622
        %v624 = vand.u32 %v171, 4294901760
        %v625 = vsub.f32 %v171, %v624
        %v626 = vand.u32 %v625, 4294901760
        %627 = vmatpush.msra.mxu0 %v626
        %v628 = vand.u32 %v170, 4294901760
        %v629 = vsub.f32 %v170, %v628
        %v630 = vand.u32 %v629, 4294901760
        %631 = vmatpush.msra.mxu0 %v630
        %v632 = vand.u32 %v169, 4294901760
        %v633 = vsub.f32 %v169, %v632
        %v634 = vand.u32 %v633, 4294901760
        %635 = vmatpush.msra.mxu0 %v634
        %v636 = vand.u32 %v429, 4294901760
        %637 = vmatmul.f32.gmra.mxu0 %v636
        %v638 = vpop.f32.mrf.mxu0
        %v639 = vadd.f32 %v594, %v638
        %v640 = vand.u32 %v432, 4294901760
        %641 = vmatmul.f32.gmra.mxu0 %v640
        %v642 = vpop.f32.mrf.mxu0
        %v643 = vadd.f32 %v600, %v642
        %644 = vdwg.mxu0
        %645 = vmatpush.msra.mxu0 0.0
        %646 = vmatpush.msra.mxu0 0.0
        %647 = vmatpush.msra.mxu0 0.0
        %648 = vmatpush.msra.mxu0 0.0
        %649 = vmatpush.msra.mxu0 0.0
        %650 = vmatpush.msra.mxu0 0.0
        %651 = vmatpush.msra.mxu0 0.0
        %652 = vmatpush.msra.mxu0 0.0
        %653 = vmatpush.msra.mxu0 0.0
        %654 = vmatpush.msra.mxu0 0.0
        %v655 = vand.u32 %v174, 4294901760
        %656 = vmatpush.msra.mxu0 %v655
        %v657 = vand.u32 %v173, 4294901760
        %658 = vmatpush.msra.mxu0 %v657
        %v659 = vand.u32 %v172, 4294901760
        %660 = vmatpush.msra.mxu0 %v659
        %v661 = vand.u32 %v171, 4294901760
        %662 = vmatpush.msra.mxu0 %v661
        %v663 = vand.u32 %v170, 4294901760
        %664 = vmatpush.msra.mxu0 %v663
        %v665 = vand.u32 %v169, 4294901760
        %666 = vmatpush.msra.mxu0 %v665
        %v667 = vand.u32 %v429, 4294901760
        %668 = vmatmul.f32.gmra.mxu0 %v667
        %v669 = vpop.f32.mrf.mxu0
        %v670 = vadd.f32 %v639, %v669
        %v671 = vand.u32 %v432, 4294901760
        %672 = vmatmul.f32.gmra.mxu0 %v671
        %v673 = vpop.f32.mrf.mxu0
        %v674 = vadd.f32 %v643, %v673
        %675 = vdwg.mxu0
        %vm676 = vcmask 261120
        %v678 = vsel %vm676, %v420, 0
        %v681 = vsel %vm676, %v424, 0
        %v684 = vsel %vm676, %v670, 0
        %v687 = vsel %vm676, %v674, 0
        %689 = vmatpush.xpose.msra.mxu0 0.0
        %690 = vmatpush.xpose.msra.mxu0 0.0
        %691 = vmatpush.xpose.msra.mxu0 0.0
        %692 = vmatpush.xpose.msra.mxu0 0.0
        %693 = vmatpush.xpose.msra.mxu0 0.0
        %694 = vmatpush.xpose.msra.mxu0 0.0
        %695 = vmatpush.xpose.msra.mxu0 0.0
        %696 = vmatpush.xpose.msra.mxu0 0.0
        %697 = vmatpush.xpose.msra.mxu0 0.0
        %698 = vmatpush.xpose.msra.mxu0 0.0
        %699 = vmatpush.xpose.msra.mxu0 0.0
        %700 = vmatpush.xpose.msra.mxu0 0.0
        %701 = vmatpush.xpose.msra.mxu0 0.0
        %702 = vmatpush.xpose.msra.mxu0 0.0
        %v703 = vand.u32 %v687, 4294901760
        %704 = vmatpush.xpose.msra.mxu0 %v703
        %v705 = vand.u32 %v684, 4294901760
        %706 = vmatpush.xpose.msra.mxu0 %v705
        %v707 = vand.u32 %v678, 4294901760
        %v708 = vsub.f32 %v678, %v707
        %v709 = vand.u32 %v708, 4294901760
        %v710 = vsub.f32 %v708, %v709
        %v711 = vand.u32 %v710, 4294901760
        %712 = vmatmul.f32.gmra.mxu0 %v711
        %v713 = vpop.f32.mrf.mxu0
        %v714 = vadd.f32 0.0, %v713
        %v715 = vand.u32 %v681, 4294901760
        %v716 = vsub.f32 %v681, %v715
        %v717 = vand.u32 %v716, 4294901760
        %v718 = vsub.f32 %v716, %v717
        %v719 = vand.u32 %v718, 4294901760
        %720 = vmatmul.f32.gmra.mxu0 %v719
        %v721 = vpop.f32.mrf.mxu0
        %v722 = vadd.f32 0.0, %v721
        %723 = vdwg.mxu0
        %724 = vmatpush.xpose.msra.mxu0 0.0
        %725 = vmatpush.xpose.msra.mxu0 0.0
        %726 = vmatpush.xpose.msra.mxu0 0.0
        %727 = vmatpush.xpose.msra.mxu0 0.0
        %728 = vmatpush.xpose.msra.mxu0 0.0
        %729 = vmatpush.xpose.msra.mxu0 0.0
        %730 = vmatpush.xpose.msra.mxu0 0.0
        %731 = vmatpush.xpose.msra.mxu0 0.0
        %732 = vmatpush.xpose.msra.mxu0 0.0
        %733 = vmatpush.xpose.msra.mxu0 0.0
        %734 = vmatpush.xpose.msra.mxu0 0.0
        %735 = vmatpush.xpose.msra.mxu0 0.0
        %736 = vmatpush.xpose.msra.mxu0 0.0
        %737 = vmatpush.xpose.msra.mxu0 0.0
        %v738 = vand.u32 %v687, 4294901760
        %v739 = vsub.f32 %v687, %v738
        %v740 = vand.u32 %v739, 4294901760
        %v741 = vsub.f32 %v739, %v740
        %v742 = vand.u32 %v741, 4294901760
        %743 = vmatpush.xpose.msra.mxu0 %v742
        %v744 = vand.u32 %v684, 4294901760
        %v745 = vsub.f32 %v684, %v744
        %v746 = vand.u32 %v745, 4294901760
        %v747 = vsub.f32 %v745, %v746
        %v748 = vand.u32 %v747, 4294901760
        %749 = vmatpush.xpose.msra.mxu0 %v748
        %v750 = vand.u32 %v678, 4294901760
        %751 = vmatmul.f32.gmra.mxu0 %v750
        %v752 = vpop.f32.mrf.mxu0
        %v753 = vadd.f32 %v714, %v752
        %v754 = vand.u32 %v681, 4294901760
        %755 = vmatmul.f32.gmra.mxu0 %v754
        %v756 = vpop.f32.mrf.mxu0
        %v757 = vadd.f32 %v722, %v756
        %758 = vdwg.mxu0
        %759 = vmatpush.xpose.msra.mxu0 0.0
        %760 = vmatpush.xpose.msra.mxu0 0.0
        %761 = vmatpush.xpose.msra.mxu0 0.0
        %762 = vmatpush.xpose.msra.mxu0 0.0
        %763 = vmatpush.xpose.msra.mxu0 0.0
        %764 = vmatpush.xpose.msra.mxu0 0.0
        %765 = vmatpush.xpose.msra.mxu0 0.0
        %766 = vmatpush.xpose.msra.mxu0 0.0
        %767 = vmatpush.xpose.msra.mxu0 0.0
        %768 = vmatpush.xpose.msra.mxu0 0.0
        %769 = vmatpush.xpose.msra.mxu0 0.0
        %770 = vmatpush.xpose.msra.mxu0 0.0
        %771 = vmatpush.xpose.msra.mxu0 0.0
        %772 = vmatpush.xpose.msra.mxu0 0.0
        %v773 = vand.u32 %v687, 4294901760
        %v774 = vsub.f32 %v687, %v773
        %775 = vmatpush.xpose.msra.mxu0 %v774
        %v776 = vand.u32 %v684, 4294901760
        %v777 = vsub.f32 %v684, %v776
        %778 = vmatpush.xpose.msra.mxu0 %v777
        %v779 = vand.u32 %v678, 4294901760
        %v780 = vsub.f32 %v678, %v779
        %781 = vmatmul.f32.gmra.mxu0 %v780
        %v782 = vpop.f32.mrf.mxu0
        %v783 = vadd.f32 %v753, %v782
        %v784 = vand.u32 %v681, 4294901760
        %v785 = vsub.f32 %v681, %v784
        %786 = vmatmul.f32.gmra.mxu0 %v785
        %v787 = vpop.f32.mrf.mxu0
        %v788 = vadd.f32 %v757, %v787
        %789 = vdwg.mxu0
        %790 = vmatpush.xpose.msra.mxu0 0.0
        %791 = vmatpush.xpose.msra.mxu0 0.0
        %792 = vmatpush.xpose.msra.mxu0 0.0
        %793 = vmatpush.xpose.msra.mxu0 0.0
        %794 = vmatpush.xpose.msra.mxu0 0.0
        %795 = vmatpush.xpose.msra.mxu0 0.0
        %796 = vmatpush.xpose.msra.mxu0 0.0
        %797 = vmatpush.xpose.msra.mxu0 0.0
        %798 = vmatpush.xpose.msra.mxu0 0.0
        %799 = vmatpush.xpose.msra.mxu0 0.0
        %800 = vmatpush.xpose.msra.mxu0 0.0
        %801 = vmatpush.xpose.msra.mxu0 0.0
        %802 = vmatpush.xpose.msra.mxu0 0.0
        %803 = vmatpush.xpose.msra.mxu0 0.0
        %v804 = vand.u32 %v687, 4294901760
        %805 = vmatpush.xpose.msra.mxu0 %v804
        %v806 = vand.u32 %v684, 4294901760
        %807 = vmatpush.xpose.msra.mxu0 %v806
        %v808 = vand.u32 %v678, 4294901760
        %v809 = vsub.f32 %v678, %v808
        %v810 = vand.u32 %v809, 4294901760
        %811 = vmatmul.f32.gmra.mxu0 %v810
        %v812 = vpop.f32.mrf.mxu0
        %v813 = vadd.f32 %v783, %v812
        %v814 = vand.u32 %v681, 4294901760
        %v815 = vsub.f32 %v681, %v814
        %v816 = vand.u32 %v815, 4294901760
        %817 = vmatmul.f32.gmra.mxu0 %v816
        %v818 = vpop.f32.mrf.mxu0
        %v819 = vadd.f32 %v788, %v818
        %820 = vdwg.mxu0
        %821 = vmatpush.xpose.msra.mxu0 0.0
        %822 = vmatpush.xpose.msra.mxu0 0.0
        %823 = vmatpush.xpose.msra.mxu0 0.0
        %824 = vmatpush.xpose.msra.mxu0 0.0
        %825 = vmatpush.xpose.msra.mxu0 0.0
        %826 = vmatpush.xpose.msra.mxu0 0.0
        %827 = vmatpush.xpose.msra.mxu0 0.0
        %828 = vmatpush.xpose.msra.mxu0 0.0
        %829 = vmatpush.xpose.msra.mxu0 0.0
        %830 = vmatpush.xpose.msra.mxu0 0.0
        %831 = vmatpush.xpose.msra.mxu0 0.0
        %832 = vmatpush.xpose.msra.mxu0 0.0
        %833 = vmatpush.xpose.msra.mxu0 0.0
        %834 = vmatpush.xpose.msra.mxu0 0.0
        %v835 = vand.u32 %v687, 4294901760
        %v836 = vsub.f32 %v687, %v835
        %v837 = vand.u32 %v836, 4294901760
        %838 = vmatpush.xpose.msra.mxu0 %v837
        %v839 = vand.u32 %v684, 4294901760
        %v840 = vsub.f32 %v684, %v839
        %v841 = vand.u32 %v840, 4294901760
        %842 = vmatpush.xpose.msra.mxu0 %v841
        %v843 = vand.u32 %v678, 4294901760
        %844 = vmatmul.f32.gmra.mxu0 %v843
        %v845 = vpop.f32.mrf.mxu0
        %v846 = vadd.f32 %v813, %v845
        %v847 = vand.u32 %v681, 4294901760
        %848 = vmatmul.f32.gmra.mxu0 %v847
        %v849 = vpop.f32.mrf.mxu0
        %v850 = vadd.f32 %v819, %v849
        %851 = vdwg.mxu0
        %852 = vmatpush.xpose.msra.mxu0 0.0
        %853 = vmatpush.xpose.msra.mxu0 0.0
        %854 = vmatpush.xpose.msra.mxu0 0.0
        %855 = vmatpush.xpose.msra.mxu0 0.0
        %856 = vmatpush.xpose.msra.mxu0 0.0
        %857 = vmatpush.xpose.msra.mxu0 0.0
        %858 = vmatpush.xpose.msra.mxu0 0.0
        %859 = vmatpush.xpose.msra.mxu0 0.0
        %860 = vmatpush.xpose.msra.mxu0 0.0
        %861 = vmatpush.xpose.msra.mxu0 0.0
        %862 = vmatpush.xpose.msra.mxu0 0.0
        %863 = vmatpush.xpose.msra.mxu0 0.0
        %864 = vmatpush.xpose.msra.mxu0 0.0
        %865 = vmatpush.xpose.msra.mxu0 0.0
        %v866 = vand.u32 %v687, 4294901760
        %867 = vmatpush.xpose.msra.mxu0 %v866
        %v868 = vand.u32 %v684, 4294901760
        %869 = vmatpush.xpose.msra.mxu0 %v868
        %v870 = vand.u32 %v678, 4294901760
        %871 = vmatmul.f32.gmra.mxu0 %v870
        %v872 = vpop.f32.mrf.mxu0
        %v873 = vadd.f32 %v846, %v872
        %v874 = vand.u32 %v681, 4294901760
        %875 = vmatmul.f32.gmra.mxu0 %v874
        %v876 = vpop.f32.mrf.mxu0
        %v877 = vadd.f32 %v850, %v876
        %878 = vdwg.mxu0
        %vm879 = vcmask 130048
        %880 = vst.msk [vmem:[%s163] sm:$0xff] %vm879, %v873
        %881 = vst.msk [vmem:[%s163 + $0x8] sm:$0xff] %vm879, %v877
        %s882 = scalar_lea.vmem %s1, 16
        %v883 = vld [vmem:[%s882] sm:$0xff]
        %v884 = vld [vmem:[%s882 + $0x8] sm:$0xff]
        %v886 = vsel %vm177, %v883, 0
        %v889 = vsel %vm177, %v884, 0
        %891 = vmatpush.msra.mxu0 0.0
        %892 = vmatpush.msra.mxu0 0.0
        %893 = vmatpush.msra.mxu0 0.0
        %894 = vmatpush.msra.mxu0 0.0
        %895 = vmatpush.msra.mxu0 0.0
        %896 = vmatpush.msra.mxu0 0.0
        %897 = vmatpush.msra.mxu0 0.0
        %898 = vmatpush.msra.mxu0 0.0
        %899 = vmatpush.msra.mxu0 0.0
        %900 = vmatpush.msra.mxu0 0.0
        %v901 = vand.u32 %v174, 4294901760
        %902 = vmatpush.msra.mxu0 %v901
        %v903 = vand.u32 %v173, 4294901760
        %904 = vmatpush.msra.mxu0 %v903
        %v905 = vand.u32 %v172, 4294901760
        %906 = vmatpush.msra.mxu0 %v905
        %v907 = vand.u32 %v171, 4294901760
        %908 = vmatpush.msra.mxu0 %v907
        %v909 = vand.u32 %v170, 4294901760
        %910 = vmatpush.msra.mxu0 %v909
        %v911 = vand.u32 %v169, 4294901760
        %912 = vmatpush.msra.mxu0 %v911
        %v913 = vand.u32 %v886, 4294901760
        %v914 = vsub.f32 %v886, %v913
        %v915 = vand.u32 %v914, 4294901760
        %v916 = vsub.f32 %v914, %v915
        %v917 = vand.u32 %v916, 4294901760
        %918 = vmatmul.f32.gmra.mxu0 %v917
        %v919 = vpop.f32.mrf.mxu0
        %v920 = vadd.f32 0.0, %v919
        %v921 = vand.u32 %v889, 4294901760
        %v922 = vsub.f32 %v889, %v921
        %v923 = vand.u32 %v922, 4294901760
        %v924 = vsub.f32 %v922, %v923
        %v925 = vand.u32 %v924, 4294901760
        %926 = vmatmul.f32.gmra.mxu0 %v925
        %v927 = vpop.f32.mrf.mxu0
        %v928 = vadd.f32 0.0, %v927
        %929 = vdwg.mxu0
        %930 = vmatpush.msra.mxu0 0.0
        %931 = vmatpush.msra.mxu0 0.0
        %932 = vmatpush.msra.mxu0 0.0
        %933 = vmatpush.msra.mxu0 0.0
        %934 = vmatpush.msra.mxu0 0.0
        %935 = vmatpush.msra.mxu0 0.0
        %936 = vmatpush.msra.mxu0 0.0
        %937 = vmatpush.msra.mxu0 0.0
        %938 = vmatpush.msra.mxu0 0.0
        %939 = vmatpush.msra.mxu0 0.0
        %v940 = vand.u32 %v174, 4294901760
        %v941 = vsub.f32 %v174, %v940
        %v942 = vand.u32 %v941, 4294901760
        %v943 = vsub.f32 %v941, %v942
        %v944 = vand.u32 %v943, 4294901760
        %945 = vmatpush.msra.mxu0 %v944
        %v946 = vand.u32 %v173, 4294901760
        %v947 = vsub.f32 %v173, %v946
        %v948 = vand.u32 %v947, 4294901760
        %v949 = vsub.f32 %v947, %v948
        %v950 = vand.u32 %v949, 4294901760
        %951 = vmatpush.msra.mxu0 %v950
        %v952 = vand.u32 %v172, 4294901760
        %v953 = vsub.f32 %v172, %v952
        %v954 = vand.u32 %v953, 4294901760
        %v955 = vsub.f32 %v953, %v954
        %v956 = vand.u32 %v955, 4294901760
        %957 = vmatpush.msra.mxu0 %v956
        %v958 = vand.u32 %v171, 4294901760
        %v959 = vsub.f32 %v171, %v958
        %v960 = vand.u32 %v959, 4294901760
        %v961 = vsub.f32 %v959, %v960
        %v962 = vand.u32 %v961, 4294901760
        %963 = vmatpush.msra.mxu0 %v962
        %v964 = vand.u32 %v170, 4294901760
        %v965 = vsub.f32 %v170, %v964
        %v966 = vand.u32 %v965, 4294901760
        %v967 = vsub.f32 %v965, %v966
        %v968 = vand.u32 %v967, 4294901760
        %969 = vmatpush.msra.mxu0 %v968
        %v970 = vand.u32 %v169, 4294901760
        %v971 = vsub.f32 %v169, %v970
        %v972 = vand.u32 %v971, 4294901760
        %v973 = vsub.f32 %v971, %v972
        %v974 = vand.u32 %v973, 4294901760
        %975 = vmatpush.msra.mxu0 %v974
        %v976 = vand.u32 %v886, 4294901760
        %977 = vmatmul.f32.gmra.mxu0 %v976
        %v978 = vpop.f32.mrf.mxu0
        %v979 = vadd.f32 %v920, %v978
        %v980 = vand.u32 %v889, 4294901760
        %981 = vmatmul.f32.gmra.mxu0 %v980
        %v982 = vpop.f32.mrf.mxu0
        %v983 = vadd.f32 %v928, %v982
        %984 = vdwg.mxu0
        %985 = vmatpush.msra.mxu0 0.0
        %986 = vmatpush.msra.mxu0 0.0
        %987 = vmatpush.msra.mxu0 0.0
        %988 = vmatpush.msra.mxu0 0.0
        %989 = vmatpush.msra.mxu0 0.0
        %990 = vmatpush.msra.mxu0 0.0
        %991 = vmatpush.msra.mxu0 0.0
        %992 = vmatpush.msra.mxu0 0.0
        %993 = vmatpush.msra.mxu0 0.0
        %994 = vmatpush.msra.mxu0 0.0
        %v995 = vand.u32 %v174, 4294901760
        %v996 = vsub.f32 %v174, %v995
        %997 = vmatpush.msra.mxu0 %v996
        %v998 = vand.u32 %v173, 4294901760
        %v999 = vsub.f32 %v173, %v998
        %1000 = vmatpush.msra.mxu0 %v999
        %v1001 = vand.u32 %v172, 4294901760
        %v1002 = vsub.f32 %v172, %v1001
        %1003 = vmatpush.msra.mxu0 %v1002
        %v1004 = vand.u32 %v171, 4294901760
        %v1005 = vsub.f32 %v171, %v1004
        %1006 = vmatpush.msra.mxu0 %v1005
        %v1007 = vand.u32 %v170, 4294901760
        %v1008 = vsub.f32 %v170, %v1007
        %1009 = vmatpush.msra.mxu0 %v1008
        %v1010 = vand.u32 %v169, 4294901760
        %v1011 = vsub.f32 %v169, %v1010
        %1012 = vmatpush.msra.mxu0 %v1011
        %v1013 = vand.u32 %v886, 4294901760
        %v1014 = vsub.f32 %v886, %v1013
        %1015 = vmatmul.f32.gmra.mxu0 %v1014
        %v1016 = vpop.f32.mrf.mxu0
        %v1017 = vadd.f32 %v979, %v1016
        %v1018 = vand.u32 %v889, 4294901760
        %v1019 = vsub.f32 %v889, %v1018
        %1020 = vmatmul.f32.gmra.mxu0 %v1019
        %v1021 = vpop.f32.mrf.mxu0
        %v1022 = vadd.f32 %v983, %v1021
        %1023 = vdwg.mxu0
        %1024 = vmatpush.msra.mxu0 0.0
        %1025 = vmatpush.msra.mxu0 0.0
        %1026 = vmatpush.msra.mxu0 0.0
        %1027 = vmatpush.msra.mxu0 0.0
        %1028 = vmatpush.msra.mxu0 0.0
        %1029 = vmatpush.msra.mxu0 0.0
        %1030 = vmatpush.msra.mxu0 0.0
        %1031 = vmatpush.msra.mxu0 0.0
        %1032 = vmatpush.msra.mxu0 0.0
        %1033 = vmatpush.msra.mxu0 0.0
        %v1034 = vand.u32 %v174, 4294901760
        %1035 = vmatpush.msra.mxu0 %v1034
        %v1036 = vand.u32 %v173, 4294901760
        %1037 = vmatpush.msra.mxu0 %v1036
        %v1038 = vand.u32 %v172, 4294901760
        %1039 = vmatpush.msra.mxu0 %v1038
        %v1040 = vand.u32 %v171, 4294901760
        %1041 = vmatpush.msra.mxu0 %v1040
        %v1042 = vand.u32 %v170, 4294901760
        %1043 = vmatpush.msra.mxu0 %v1042
        %v1044 = vand.u32 %v169, 4294901760
        %1045 = vmatpush.msra.mxu0 %v1044
        %v1046 = vand.u32 %v886, 4294901760
        %v1047 = vsub.f32 %v886, %v1046
        %v1048 = vand.u32 %v1047, 4294901760
        %1049 = vmatmul.f32.gmra.mxu0 %v1048
        %v1050 = vpop.f32.mrf.mxu0
        %v1051 = vadd.f32 %v1017, %v1050
        %v1052 = vand.u32 %v889, 4294901760
        %v1053 = vsub.f32 %v889, %v1052
        %v1054 = vand.u32 %v1053, 4294901760
        %1055 = vmatmul.f32.gmra.mxu0 %v1054
        %v1056 = vpop.f32.mrf.mxu0
        %v1057 = vadd.f32 %v1022, %v1056
        %1058 = vdwg.mxu0
        %1059 = vmatpush.msra.mxu0 0.0
        %1060 = vmatpush.msra.mxu0 0.0
        %1061 = vmatpush.msra.mxu0 0.0
        %1062 = vmatpush.msra.mxu0 0.0
        %1063 = vmatpush.msra.mxu0 0.0
        %1064 = vmatpush.msra.mxu0 0.0
        %1065 = vmatpush.msra.mxu0 0.0
        %1066 = vmatpush.msra.mxu0 0.0
        %1067 = vmatpush.msra.mxu0 0.0
        %1068 = vmatpush.msra.mxu0 0.0
        %v1069 = vand.u32 %v174, 4294901760
        %v1070 = vsub.f32 %v174, %v1069
        %v1071 = vand.u32 %v1070, 4294901760
        %1072 = vmatpush.msra.mxu0 %v1071
        %v1073 = vand.u32 %v173, 4294901760
        %v1074 = vsub.f32 %v173, %v1073
        %v1075 = vand.u32 %v1074, 4294901760
        %1076 = vmatpush.msra.mxu0 %v1075
        %v1077 = vand.u32 %v172, 4294901760
        %v1078 = vsub.f32 %v172, %v1077
        %v1079 = vand.u32 %v1078, 4294901760
        %1080 = vmatpush.msra.mxu0 %v1079
        %v1081 = vand.u32 %v171, 4294901760
        %v1082 = vsub.f32 %v171, %v1081
        %v1083 = vand.u32 %v1082, 4294901760
        %1084 = vmatpush.msra.mxu0 %v1083
        %v1085 = vand.u32 %v170, 4294901760
        %v1086 = vsub.f32 %v170, %v1085
        %v1087 = vand.u32 %v1086, 4294901760
        %1088 = vmatpush.msra.mxu0 %v1087
        %v1089 = vand.u32 %v169, 4294901760
        %v1090 = vsub.f32 %v169, %v1089
        %v1091 = vand.u32 %v1090, 4294901760
        %1092 = vmatpush.msra.mxu0 %v1091
        %v1093 = vand.u32 %v886, 4294901760
        %1094 = vmatmul.f32.gmra.mxu0 %v1093
        %v1095 = vpop.f32.mrf.mxu0
        %v1096 = vadd.f32 %v1051, %v1095
        %v1097 = vand.u32 %v889, 4294901760
        %1098 = vmatmul.f32.gmra.mxu0 %v1097
        %v1099 = vpop.f32.mrf.mxu0
        %v1100 = vadd.f32 %v1057, %v1099
        %1101 = vdwg.mxu0
        %1102 = vmatpush.msra.mxu0 0.0
        %1103 = vmatpush.msra.mxu0 0.0
        %1104 = vmatpush.msra.mxu0 0.0
        %1105 = vmatpush.msra.mxu0 0.0
        %1106 = vmatpush.msra.mxu0 0.0
        %1107 = vmatpush.msra.mxu0 0.0
        %1108 = vmatpush.msra.mxu0 0.0
        %1109 = vmatpush.msra.mxu0 0.0
        %1110 = vmatpush.msra.mxu0 0.0
        %1111 = vmatpush.msra.mxu0 0.0
        %v1112 = vand.u32 %v174, 4294901760
        %1113 = vmatpush.msra.mxu0 %v1112
        %v1114 = vand.u32 %v173, 4294901760
        %1115 = vmatpush.msra.mxu0 %v1114
        %v1116 = vand.u32 %v172, 4294901760
        %1117 = vmatpush.msra.mxu0 %v1116
        %v1118 = vand.u32 %v171, 4294901760
        %1119 = vmatpush.msra.mxu0 %v1118
        %v1120 = vand.u32 %v170, 4294901760
        %1121 = vmatpush.msra.mxu0 %v1120
        %v1122 = vand.u32 %v169, 4294901760
        %1123 = vmatpush.msra.mxu0 %v1122
        %v1124 = vand.u32 %v886, 4294901760
        %1125 = vmatmul.f32.gmra.mxu0 %v1124
        %v1126 = vpop.f32.mrf.mxu0
        %v1127 = vadd.f32 %v1096, %v1126
        %v1128 = vand.u32 %v889, 4294901760
        %1129 = vmatmul.f32.gmra.mxu0 %v1128
        %v1130 = vpop.f32.mrf.mxu0
        %v1131 = vadd.f32 %v1100, %v1130
        %1132 = vdwg.mxu0
        %s1133 = scalar_lea.vmem %s2, 16
        %v1134 = vld [vmem:[%s1133] sm:$0xff]
        %v1135 = vld [vmem:[%s1133 + $0x8] sm:$0xff]
        %v1137 = vsel %vm177, %v1134, 0
        %v1140 = vsel %vm177, %v1135, 0
        %1142 = vmatpush.msra.mxu0 0.0
        %1143 = vmatpush.msra.mxu0 0.0
        %1144 = vmatpush.msra.mxu0 0.0
        %1145 = vmatpush.msra.mxu0 0.0
        %1146 = vmatpush.msra.mxu0 0.0
        %1147 = vmatpush.msra.mxu0 0.0
        %1148 = vmatpush.msra.mxu0 0.0
        %1149 = vmatpush.msra.mxu0 0.0
        %1150 = vmatpush.msra.mxu0 0.0
        %1151 = vmatpush.msra.mxu0 0.0
        %v1152 = vand.u32 %v174, 4294901760
        %1153 = vmatpush.msra.mxu0 %v1152
        %v1154 = vand.u32 %v173, 4294901760
        %1155 = vmatpush.msra.mxu0 %v1154
        %v1156 = vand.u32 %v172, 4294901760
        %1157 = vmatpush.msra.mxu0 %v1156
        %v1158 = vand.u32 %v171, 4294901760
        %1159 = vmatpush.msra.mxu0 %v1158
        %v1160 = vand.u32 %v170, 4294901760
        %1161 = vmatpush.msra.mxu0 %v1160
        %v1162 = vand.u32 %v169, 4294901760
        %1163 = vmatpush.msra.mxu0 %v1162
        %v1164 = vand.u32 %v1137, 4294901760
        %v1165 = vsub.f32 %v1137, %v1164
        %v1166 = vand.u32 %v1165, 4294901760
        %v1167 = vsub.f32 %v1165, %v1166
        %v1168 = vand.u32 %v1167, 4294901760
        %1169 = vmatmul.f32.gmra.mxu0 %v1168
        %v1170 = vpop.f32.mrf.mxu0
        %v1171 = vadd.f32 0.0, %v1170
        %v1172 = vand.u32 %v1140, 4294901760
        %v1173 = vsub.f32 %v1140, %v1172
        %v1174 = vand.u32 %v1173, 4294901760
        %v1175 = vsub.f32 %v1173, %v1174
        %v1176 = vand.u32 %v1175, 4294901760
        %1177 = vmatmul.f32.gmra.mxu0 %v1176
        %v1178 = vpop.f32.mrf.mxu0
        %v1179 = vadd.f32 0.0, %v1178
        %1180 = vdwg.mxu0
        %1181 = vmatpush.msra.mxu0 0.0
        %1182 = vmatpush.msra.mxu0 0.0
        %1183 = vmatpush.msra.mxu0 0.0
        %1184 = vmatpush.msra.mxu0 0.0
        %1185 = vmatpush.msra.mxu0 0.0
        %1186 = vmatpush.msra.mxu0 0.0
        %1187 = vmatpush.msra.mxu0 0.0
        %1188 = vmatpush.msra.mxu0 0.0
        %1189 = vmatpush.msra.mxu0 0.0
        %1190 = vmatpush.msra.mxu0 0.0
        %v1191 = vand.u32 %v174, 4294901760
        %v1192 = vsub.f32 %v174, %v1191
        %v1193 = vand.u32 %v1192, 4294901760
        %v1194 = vsub.f32 %v1192, %v1193
        %v1195 = vand.u32 %v1194, 4294901760
        %1196 = vmatpush.msra.mxu0 %v1195
        %v1197 = vand.u32 %v173, 4294901760
        %v1198 = vsub.f32 %v173, %v1197
        %v1199 = vand.u32 %v1198, 4294901760
        %v1200 = vsub.f32 %v1198, %v1199
        %v1201 = vand.u32 %v1200, 4294901760
        %1202 = vmatpush.msra.mxu0 %v1201
        %v1203 = vand.u32 %v172, 4294901760
        %v1204 = vsub.f32 %v172, %v1203
        %v1205 = vand.u32 %v1204, 4294901760
        %v1206 = vsub.f32 %v1204, %v1205
        %v1207 = vand.u32 %v1206, 4294901760
        %1208 = vmatpush.msra.mxu0 %v1207
        %v1209 = vand.u32 %v171, 4294901760
        %v1210 = vsub.f32 %v171, %v1209
        %v1211 = vand.u32 %v1210, 4294901760
        %v1212 = vsub.f32 %v1210, %v1211
        %v1213 = vand.u32 %v1212, 4294901760
        %1214 = vmatpush.msra.mxu0 %v1213
        %v1215 = vand.u32 %v170, 4294901760
        %v1216 = vsub.f32 %v170, %v1215
        %v1217 = vand.u32 %v1216, 4294901760
        %v1218 = vsub.f32 %v1216, %v1217
        %v1219 = vand.u32 %v1218, 4294901760
        %1220 = vmatpush.msra.mxu0 %v1219
        %v1221 = vand.u32 %v169, 4294901760
        %v1222 = vsub.f32 %v169, %v1221
        %v1223 = vand.u32 %v1222, 4294901760
        %v1224 = vsub.f32 %v1222, %v1223
        %v1225 = vand.u32 %v1224, 4294901760
        %1226 = vmatpush.msra.mxu0 %v1225
        %v1227 = vand.u32 %v1137, 4294901760
        %1228 = vmatmul.f32.gmra.mxu0 %v1227
        %v1229 = vpop.f32.mrf.mxu0
        %v1230 = vadd.f32 %v1171, %v1229
        %v1231 = vand.u32 %v1140, 4294901760
        %1232 = vmatmul.f32.gmra.mxu0 %v1231
        %v1233 = vpop.f32.mrf.mxu0
        %v1234 = vadd.f32 %v1179, %v1233
        %1235 = vdwg.mxu0
        %1236 = vmatpush.msra.mxu0 0.0
        %1237 = vmatpush.msra.mxu0 0.0
        %1238 = vmatpush.msra.mxu0 0.0
        %1239 = vmatpush.msra.mxu0 0.0
        %1240 = vmatpush.msra.mxu0 0.0
        %1241 = vmatpush.msra.mxu0 0.0
        %1242 = vmatpush.msra.mxu0 0.0
        %1243 = vmatpush.msra.mxu0 0.0
        %1244 = vmatpush.msra.mxu0 0.0
        %1245 = vmatpush.msra.mxu0 0.0
        %v1246 = vand.u32 %v174, 4294901760
        %v1247 = vsub.f32 %v174, %v1246
        %1248 = vmatpush.msra.mxu0 %v1247
        %v1249 = vand.u32 %v173, 4294901760
        %v1250 = vsub.f32 %v173, %v1249
        %1251 = vmatpush.msra.mxu0 %v1250
        %v1252 = vand.u32 %v172, 4294901760
        %v1253 = vsub.f32 %v172, %v1252
        %1254 = vmatpush.msra.mxu0 %v1253
        %v1255 = vand.u32 %v171, 4294901760
        %v1256 = vsub.f32 %v171, %v1255
        %1257 = vmatpush.msra.mxu0 %v1256
        %v1258 = vand.u32 %v170, 4294901760
        %v1259 = vsub.f32 %v170, %v1258
        %1260 = vmatpush.msra.mxu0 %v1259
        %v1261 = vand.u32 %v169, 4294901760
        %v1262 = vsub.f32 %v169, %v1261
        %1263 = vmatpush.msra.mxu0 %v1262
        %v1264 = vand.u32 %v1137, 4294901760
        %v1265 = vsub.f32 %v1137, %v1264
        %1266 = vmatmul.f32.gmra.mxu0 %v1265
        %v1267 = vpop.f32.mrf.mxu0
        %v1268 = vadd.f32 %v1230, %v1267
        %v1269 = vand.u32 %v1140, 4294901760
        %v1270 = vsub.f32 %v1140, %v1269
        %1271 = vmatmul.f32.gmra.mxu0 %v1270
        %v1272 = vpop.f32.mrf.mxu0
        %v1273 = vadd.f32 %v1234, %v1272
        %1274 = vdwg.mxu0
        %1275 = vmatpush.msra.mxu0 0.0
        %1276 = vmatpush.msra.mxu0 0.0
        %1277 = vmatpush.msra.mxu0 0.0
        %1278 = vmatpush.msra.mxu0 0.0
        %1279 = vmatpush.msra.mxu0 0.0
        %1280 = vmatpush.msra.mxu0 0.0
        %1281 = vmatpush.msra.mxu0 0.0
        %1282 = vmatpush.msra.mxu0 0.0
        %1283 = vmatpush.msra.mxu0 0.0
        %1284 = vmatpush.msra.mxu0 0.0
        %v1285 = vand.u32 %v174, 4294901760
        %1286 = vmatpush.msra.mxu0 %v1285
        %v1287 = vand.u32 %v173, 4294901760
        %1288 = vmatpush.msra.mxu0 %v1287
        %v1289 = vand.u32 %v172, 4294901760
        %1290 = vmatpush.msra.mxu0 %v1289
        %v1291 = vand.u32 %v171, 4294901760
        %1292 = vmatpush.msra.mxu0 %v1291
        %v1293 = vand.u32 %v170, 4294901760
        %1294 = vmatpush.msra.mxu0 %v1293
        %v1295 = vand.u32 %v169, 4294901760
        %1296 = vmatpush.msra.mxu0 %v1295
        %v1297 = vand.u32 %v1137, 4294901760
        %v1298 = vsub.f32 %v1137, %v1297
        %v1299 = vand.u32 %v1298, 4294901760
        %1300 = vmatmul.f32.gmra.mxu0 %v1299
        %v1301 = vpop.f32.mrf.mxu0
        %v1302 = vadd.f32 %v1268, %v1301
        %v1303 = vand.u32 %v1140, 4294901760
        %v1304 = vsub.f32 %v1140, %v1303
        %v1305 = vand.u32 %v1304, 4294901760
        %1306 = vmatmul.f32.gmra.mxu0 %v1305
        %v1307 = vpop.f32.mrf.mxu0
        %v1308 = vadd.f32 %v1273, %v1307
        %1309 = vdwg.mxu0
        %1310 = vmatpush.msra.mxu0 0.0
        %1311 = vmatpush.msra.mxu0 0.0
        %1312 = vmatpush.msra.mxu0 0.0
        %1313 = vmatpush.msra.mxu0 0.0
        %1314 = vmatpush.msra.mxu0 0.0
        %1315 = vmatpush.msra.mxu0 0.0
        %1316 = vmatpush.msra.mxu0 0.0
        %1317 = vmatpush.msra.mxu0 0.0
        %1318 = vmatpush.msra.mxu0 0.0
        %1319 = vmatpush.msra.mxu0 0.0
        %v1320 = vand.u32 %v174, 4294901760
        %v1321 = vsub.f32 %v174, %v1320
        %v1322 = vand.u32 %v1321, 4294901760
        %1323 = vmatpush.msra.mxu0 %v1322
        %v1324 = vand.u32 %v173, 4294901760
        %v1325 = vsub.f32 %v173, %v1324
        %v1326 = vand.u32 %v1325, 4294901760
        %1327 = vmatpush.msra.mxu0 %v1326
        %v1328 = vand.u32 %v172, 4294901760
        %v1329 = vsub.f32 %v172, %v1328
        %v1330 = vand.u32 %v1329, 4294901760
        %1331 = vmatpush.msra.mxu0 %v1330
        %v1332 = vand.u32 %v171, 4294901760
        %v1333 = vsub.f32 %v171, %v1332
        %v1334 = vand.u32 %v1333, 4294901760
        %1335 = vmatpush.msra.mxu0 %v1334
        %v1336 = vand.u32 %v170, 4294901760
        %v1337 = vsub.f32 %v170, %v1336
        %v1338 = vand.u32 %v1337, 4294901760
        %1339 = vmatpush.msra.mxu0 %v1338
        %v1340 = vand.u32 %v169, 4294901760
        %v1341 = vsub.f32 %v169, %v1340
        %v1342 = vand.u32 %v1341, 4294901760
        %1343 = vmatpush.msra.mxu0 %v1342
        %v1344 = vand.u32 %v1137, 4294901760
        %1345 = vmatmul.f32.gmra.mxu0 %v1344
        %v1346 = vpop.f32.mrf.mxu0
        %v1347 = vadd.f32 %v1302, %v1346
        %v1348 = vand.u32 %v1140, 4294901760
        %1349 = vmatmul.f32.gmra.mxu0 %v1348
        %v1350 = vpop.f32.mrf.mxu0
        %v1351 = vadd.f32 %v1308, %v1350
        %1352 = vdwg.mxu0
        %1353 = vmatpush.msra.mxu0 0.0
        %1354 = vmatpush.msra.mxu0 0.0
        %1355 = vmatpush.msra.mxu0 0.0
        %1356 = vmatpush.msra.mxu0 0.0
        %1357 = vmatpush.msra.mxu0 0.0
        %1358 = vmatpush.msra.mxu0 0.0
        %1359 = vmatpush.msra.mxu0 0.0
        %1360 = vmatpush.msra.mxu0 0.0
        %1361 = vmatpush.msra.mxu0 0.0
        %1362 = vmatpush.msra.mxu0 0.0
        %v1363 = vand.u32 %v174, 4294901760
        %1364 = vmatpush.msra.mxu0 %v1363
        %v1365 = vand.u32 %v173, 4294901760
        %1366 = vmatpush.msra.mxu0 %v1365
        %v1367 = vand.u32 %v172, 4294901760
        %1368 = vmatpush.msra.mxu0 %v1367
        %v1369 = vand.u32 %v171, 4294901760
        %1370 = vmatpush.msra.mxu0 %v1369
        %v1371 = vand.u32 %v170, 4294901760
        %1372 = vmatpush.msra.mxu0 %v1371
        %v1373 = vand.u32 %v169, 4294901760
        %1374 = vmatpush.msra.mxu0 %v1373
        %v1375 = vand.u32 %v1137, 4294901760
        %1376 = vmatmul.f32.gmra.mxu0 %v1375
        %v1377 = vpop.f32.mrf.mxu0
        %v1378 = vadd.f32 %v1347, %v1377
        %v1379 = vand.u32 %v1140, 4294901760
        %1380 = vmatmul.f32.gmra.mxu0 %v1379
        %v1381 = vpop.f32.mrf.mxu0
        %v1382 = vadd.f32 %v1351, %v1381
        %1383 = vdwg.mxu0
        %v1385 = vsel %vm676, %v1127, 0
        %v1388 = vsel %vm676, %v1131, 0
        %v1391 = vsel %vm676, %v1378, 0
        %v1394 = vsel %vm676, %v1382, 0
        %1396 = vmatpush.xpose.msra.mxu0 0.0
        %1397 = vmatpush.xpose.msra.mxu0 0.0
        %1398 = vmatpush.xpose.msra.mxu0 0.0
        %1399 = vmatpush.xpose.msra.mxu0 0.0
        %1400 = vmatpush.xpose.msra.mxu0 0.0
        %1401 = vmatpush.xpose.msra.mxu0 0.0
        %1402 = vmatpush.xpose.msra.mxu0 0.0
        %1403 = vmatpush.xpose.msra.mxu0 0.0
        %1404 = vmatpush.xpose.msra.mxu0 0.0
        %1405 = vmatpush.xpose.msra.mxu0 0.0
        %1406 = vmatpush.xpose.msra.mxu0 0.0
        %1407 = vmatpush.xpose.msra.mxu0 0.0
        %1408 = vmatpush.xpose.msra.mxu0 0.0
        %1409 = vmatpush.xpose.msra.mxu0 0.0
        %v1410 = vand.u32 %v1394, 4294901760
        %1411 = vmatpush.xpose.msra.mxu0 %v1410
        %v1412 = vand.u32 %v1391, 4294901760
        %1413 = vmatpush.xpose.msra.mxu0 %v1412
        %v1414 = vand.u32 %v1385, 4294901760
        %v1415 = vsub.f32 %v1385, %v1414
        %v1416 = vand.u32 %v1415, 4294901760
        %v1417 = vsub.f32 %v1415, %v1416
        %v1418 = vand.u32 %v1417, 4294901760
        %1419 = vmatmul.f32.gmra.mxu0 %v1418
        %v1420 = vpop.f32.mrf.mxu0
        %v1421 = vadd.f32 0.0, %v1420
        %v1422 = vand.u32 %v1388, 4294901760
        %v1423 = vsub.f32 %v1388, %v1422
        %v1424 = vand.u32 %v1423, 4294901760
        %v1425 = vsub.f32 %v1423, %v1424
        %v1426 = vand.u32 %v1425, 4294901760
        %1427 = vmatmul.f32.gmra.mxu0 %v1426
        %v1428 = vpop.f32.mrf.mxu0
        %v1429 = vadd.f32 0.0, %v1428
        %1430 = vdwg.mxu0
        %1431 = vmatpush.xpose.msra.mxu0 0.0
        %1432 = vmatpush.xpose.msra.mxu0 0.0
        %1433 = vmatpush.xpose.msra.mxu0 0.0
        %1434 = vmatpush.xpose.msra.mxu0 0.0
        %1435 = vmatpush.xpose.msra.mxu0 0.0
        %1436 = vmatpush.xpose.msra.mxu0 0.0
        %1437 = vmatpush.xpose.msra.mxu0 0.0
        %1438 = vmatpush.xpose.msra.mxu0 0.0
        %1439 = vmatpush.xpose.msra.mxu0 0.0
        %1440 = vmatpush.xpose.msra.mxu0 0.0
        %1441 = vmatpush.xpose.msra.mxu0 0.0
        %1442 = vmatpush.xpose.msra.mxu0 0.0
        %1443 = vmatpush.xpose.msra.mxu0 0.0
        %1444 = vmatpush.xpose.msra.mxu0 0.0
        %v1445 = vand.u32 %v1394, 4294901760
        %v1446 = vsub.f32 %v1394, %v1445
        %v1447 = vand.u32 %v1446, 4294901760
        %v1448 = vsub.f32 %v1446, %v1447
        %v1449 = vand.u32 %v1448, 4294901760
        %1450 = vmatpush.xpose.msra.mxu0 %v1449
        %v1451 = vand.u32 %v1391, 4294901760
        %v1452 = vsub.f32 %v1391, %v1451
        %v1453 = vand.u32 %v1452, 4294901760
        %v1454 = vsub.f32 %v1452, %v1453
        %v1455 = vand.u32 %v1454, 4294901760
        %1456 = vmatpush.xpose.msra.mxu0 %v1455
        %v1457 = vand.u32 %v1385, 4294901760
        %1458 = vmatmul.f32.gmra.mxu0 %v1457
        %v1459 = vpop.f32.mrf.mxu0
        %v1460 = vadd.f32 %v1421, %v1459
        %v1461 = vand.u32 %v1388, 4294901760
        %1462 = vmatmul.f32.gmra.mxu0 %v1461
        %v1463 = vpop.f32.mrf.mxu0
        %v1464 = vadd.f32 %v1429, %v1463
        %1465 = vdwg.mxu0
        %1466 = vmatpush.xpose.msra.mxu0 0.0
        %1467 = vmatpush.xpose.msra.mxu0 0.0
        %1468 = vmatpush.xpose.msra.mxu0 0.0
        %1469 = vmatpush.xpose.msra.mxu0 0.0
        %1470 = vmatpush.xpose.msra.mxu0 0.0
        %1471 = vmatpush.xpose.msra.mxu0 0.0
        %1472 = vmatpush.xpose.msra.mxu0 0.0
        %1473 = vmatpush.xpose.msra.mxu0 0.0
        %1474 = vmatpush.xpose.msra.mxu0 0.0
        %1475 = vmatpush.xpose.msra.mxu0 0.0
        %1476 = vmatpush.xpose.msra.mxu0 0.0
        %1477 = vmatpush.xpose.msra.mxu0 0.0
        %1478 = vmatpush.xpose.msra.mxu0 0.0
        %1479 = vmatpush.xpose.msra.mxu0 0.0
        %v1480 = vand.u32 %v1394, 4294901760
        %v1481 = vsub.f32 %v1394, %v1480
        %1482 = vmatpush.xpose.msra.mxu0 %v1481
        %v1483 = vand.u32 %v1391, 4294901760
        %v1484 = vsub.f32 %v1391, %v1483
        %1485 = vmatpush.xpose.msra.mxu0 %v1484
        %v1486 = vand.u32 %v1385, 4294901760
        %v1487 = vsub.f32 %v1385, %v1486
        %1488 = vmatmul.f32.gmra.mxu0 %v1487
        %v1489 = vpop.f32.mrf.mxu0
        %v1490 = vadd.f32 %v1460, %v1489
        %v1491 = vand.u32 %v1388, 4294901760
        %v1492 = vsub.f32 %v1388, %v1491
        %1493 = vmatmul.f32.gmra.mxu0 %v1492
        %v1494 = vpop.f32.mrf.mxu0
        %v1495 = vadd.f32 %v1464, %v1494
        %1496 = vdwg.mxu0
        %1497 = vmatpush.xpose.msra.mxu0 0.0
        %1498 = vmatpush.xpose.msra.mxu0 0.0
        %1499 = vmatpush.xpose.msra.mxu0 0.0
        %1500 = vmatpush.xpose.msra.mxu0 0.0
        %1501 = vmatpush.xpose.msra.mxu0 0.0
        %1502 = vmatpush.xpose.msra.mxu0 0.0
        %1503 = vmatpush.xpose.msra.mxu0 0.0
        %1504 = vmatpush.xpose.msra.mxu0 0.0
        %1505 = vmatpush.xpose.msra.mxu0 0.0
        %1506 = vmatpush.xpose.msra.mxu0 0.0
        %1507 = vmatpush.xpose.msra.mxu0 0.0
        %1508 = vmatpush.xpose.msra.mxu0 0.0
        %1509 = vmatpush.xpose.msra.mxu0 0.0
        %1510 = vmatpush.xpose.msra.mxu0 0.0
        %v1511 = vand.u32 %v1394, 4294901760
        %1512 = vmatpush.xpose.msra.mxu0 %v1511
        %v1513 = vand.u32 %v1391, 4294901760
        %1514 = vmatpush.xpose.msra.mxu0 %v1513
        %v1515 = vand.u32 %v1385, 4294901760
        %v1516 = vsub.f32 %v1385, %v1515
        %v1517 = vand.u32 %v1516, 4294901760
        %1518 = vmatmul.f32.gmra.mxu0 %v1517
        %v1519 = vpop.f32.mrf.mxu0
        %v1520 = vadd.f32 %v1490, %v1519
        %v1521 = vand.u32 %v1388, 4294901760
        %v1522 = vsub.f32 %v1388, %v1521
        %v1523 = vand.u32 %v1522, 4294901760
        %1524 = vmatmul.f32.gmra.mxu0 %v1523
        %v1525 = vpop.f32.mrf.mxu0
        %v1526 = vadd.f32 %v1495, %v1525
        %1527 = vdwg.mxu0
        %1528 = vmatpush.xpose.msra.mxu0 0.0
        %1529 = vmatpush.xpose.msra.mxu0 0.0
        %1530 = vmatpush.xpose.msra.mxu0 0.0
        %1531 = vmatpush.xpose.msra.mxu0 0.0
        %1532 = vmatpush.xpose.msra.mxu0 0.0
        %1533 = vmatpush.xpose.msra.mxu0 0.0
        %1534 = vmatpush.xpose.msra.mxu0 0.0
        %1535 = vmatpush.xpose.msra.mxu0 0.0
        %1536 = vmatpush.xpose.msra.mxu0 0.0
        %1537 = vmatpush.xpose.msra.mxu0 0.0
        %1538 = vmatpush.xpose.msra.mxu0 0.0
        %1539 = vmatpush.xpose.msra.mxu0 0.0
        %1540 = vmatpush.xpose.msra.mxu0 0.0
        %1541 = vmatpush.xpose.msra.mxu0 0.0
        %v1542 = vand.u32 %v1394, 4294901760
        %v1543 = vsub.f32 %v1394, %v1542
        %v1544 = vand.u32 %v1543, 4294901760
        %1545 = vmatpush.xpose.msra.mxu0 %v1544
        %v1546 = vand.u32 %v1391, 4294901760
        %v1547 = vsub.f32 %v1391, %v1546
        %v1548 = vand.u32 %v1547, 4294901760
        %1549 = vmatpush.xpose.msra.mxu0 %v1548
        %v1550 = vand.u32 %v1385, 4294901760
        %1551 = vmatmul.f32.gmra.mxu0 %v1550
        %v1552 = vpop.f32.mrf.mxu0
        %v1553 = vadd.f32 %v1520, %v1552
        %v1554 = vand.u32 %v1388, 4294901760
        %1555 = vmatmul.f32.gmra.mxu0 %v1554
        %v1556 = vpop.f32.mrf.mxu0
        %v1557 = vadd.f32 %v1526, %v1556
        %1558 = vdwg.mxu0
        %1559 = vmatpush.xpose.msra.mxu0 0.0
        %1560 = vmatpush.xpose.msra.mxu0 0.0
        %1561 = vmatpush.xpose.msra.mxu0 0.0
        %1562 = vmatpush.xpose.msra.mxu0 0.0
        %1563 = vmatpush.xpose.msra.mxu0 0.0
        %1564 = vmatpush.xpose.msra.mxu0 0.0
        %1565 = vmatpush.xpose.msra.mxu0 0.0
        %1566 = vmatpush.xpose.msra.mxu0 0.0
        %1567 = vmatpush.xpose.msra.mxu0 0.0
        %1568 = vmatpush.xpose.msra.mxu0 0.0
        %1569 = vmatpush.xpose.msra.mxu0 0.0
        %1570 = vmatpush.xpose.msra.mxu0 0.0
        %1571 = vmatpush.xpose.msra.mxu0 0.0
        %1572 = vmatpush.xpose.msra.mxu0 0.0
        %v1573 = vand.u32 %v1394, 4294901760
        %1574 = vmatpush.xpose.msra.mxu0 %v1573
        %v1575 = vand.u32 %v1391, 4294901760
        %1576 = vmatpush.xpose.msra.mxu0 %v1575
        %v1577 = vand.u32 %v1385, 4294901760
        %1578 = vmatmul.f32.gmra.mxu0 %v1577
        %v1579 = vpop.f32.mrf.mxu0
        %v1580 = vadd.f32 %v1553, %v1579
        %v1581 = vand.u32 %v1388, 4294901760
        %1582 = vmatmul.f32.gmra.mxu0 %v1581
        %v1583 = vpop.f32.mrf.mxu0
        %v1584 = vadd.f32 %v1557, %v1583
        %1585 = vdwg.mxu0
        %s1586 = scalar_lea.vmem %s163, 16 [#allocation2]
        %1587 = vst.msk [vmem:[%s1586] sm:$0xff] %vm879, %v1580
        %1588 = vst.msk [vmem:[%s1586 + $0x8] sm:$0xff] %vm879, %v1584
        %s1589 = sand.u32 %s93, 1
        %s1590 = scalar_lea.sflag [#allocation3], %s1589
        %s1591 = sand.u32 %s93, 1
        %s1592 = smul.addr %s1591, 32
        %s1593 = scalar_lea.vmem [#allocation2], %s1592
        // Predicated region
        $region33: #{tpu_custom_call.1} parent=31 // pred_check
          %p1594 = pneg %p103
        $region34: #{tpu_custom_call.1} parent=31 // pred_check_branch
          %1596 = sbr.rel (%p1594) target = $region36
        $region35: #{tpu_custom_call.1} parent=31 // pred_region
          %1598 = vsyncadd %s1590, 0
          %s1599 = smul.addr %s17, 4
          %s1600 = smul.addr %s1599, 8
          %s1601 = scalar_lea.hbm %s3, %s1600
          %s1602 = sshll.u32 %s1593, 4
          %s1603 = int_to_ptr.vmem [resolvable:$true] %s1602
          %s1604 = sshll.u32 %s1601, 4
          %s1605 = int_to_ptr.hbm [resolvable:$true] %s1604
          %1610 = dma.vmem_to_hbm [thread:$0]  %s1603, 512, %s1605, %s1590, 128, 128, 8
        $region36: #{tpu_custom_call.1} parent=31 // pred_fallthru
          _
      $region32: #{tpu_custom_call.1} parent=5 // pred_fallthru
        _
      %p1611 = scmp.le.s32.totalorder 2, %s12
      // Predicated region
      $region37: #{tpu_custom_call.1} parent=5 // pred_check
        %p1612 = pneg %p1611
      $region38: #{tpu_custom_call.1} parent=5 // pred_check_branch
        %1614 = sbr.rel (%p1612) target = $region40
      $region39: #{tpu_custom_call.1} parent=5 // pred_region
        %s1615 = ssub.s32 %s12, 2
        // Predicated region
        $region41: #{tpu_custom_call.1} parent=39 // pred_check
          %p1616 = pneg %p109
        $region42: #{tpu_custom_call.1} parent=39 // pred_check_branch
          %1618 = sbr.rel (%p1616) target = $region44
        $region43: #{tpu_custom_call.1} parent=39 // pred_region
          %s1619 = sand.u32 %s94, 1
          %s1620 = scalar_lea.sflag [#allocation3], %s1619
          %s1621 = sand.u32 %s94, 1
          %s1622 = smul.addr %s1621, 32
          %s1623 = scalar_lea.vmem [#allocation2], %s1622
          %1625 = dma.done %s1620, 512
        $region44: #{tpu_custom_call.1} parent=39 // pred_fallthru
          _
      $region40: #{tpu_custom_call.1} parent=5 // pred_fallthru
        _
    $region6: #{tpu_custom_call.1} parent=1 // loop_footer
      %s16 = sadd.s32 1, %s12
    $region7: #{tpu_custom_call.1} parent=1 // loop_footer_branch
      %11 = sbr.rel target = $region3
    $region8: #{tpu_custom_call.1} parent=1 // loop_exit
      _
    %1626 = vsyncpa [#allocation3], 1
    %s1627 = scalar_lea.sflag [#allocation3], 1
    %1628 = vsyncpa %s1627, 1

</llo_original>
